<compile_context>
chip_gen: v7x
topology: tpu7x:2x2x1
jax: 0.10.0
libtpu: 0.0.40
codegen_flags: <defaults>
</compile_context>

<pallas_src>
import functools

import jax
import jax.numpy as jnp
from jax.experimental import pallas as pl
from jax.experimental.pallas import tpu as pltpu

BN_EPS = 1e-5


# ----------------------------------------------------------------------------
# Fused Pallas kernel: conv(1x1)+BN+ReLU chain -> global max-pool -> FC stack
# ----------------------------------------------------------------------------
def _fused_discriminator_kernel(*refs, B, N, N_valid, conv_meta, fc_meta):
    """Whole forward pass in one kernel; everything VMEM/vreg resident.

    refs = (x, w_conv..., w_fc..., conv_ss, fc_ss, out)
      x        : (Cin_pad, B*N)  bf16  channels on sublanes, batch*points on lanes
      w_conv_i : (Cout, Cin)     bf16
      w_fc_j   : (Cin, Cout)     bf16 (first one f32), pre-transposed at init
      conv_ss  : (sum conv Cout, 2) f32   [:, 0]=scale, [:, 1]=shift  (columns)
      fc_ss    : (2, sum 128-padded fc Cout) f32  row0=scale, row1=shift (rows)
      out      : (B, 1) f32
    """
    n_conv, n_fc = len(conv_meta), len(fc_meta)
    x_ref = refs[0]
    w_refs = refs[1:1 + n_conv + n_fc]
    conv_ss_ref = refs[1 + n_conv + n_fc]
    fc_ss_ref = refs[2 + n_conv + n_fc]
    out_ref = refs[-1]

    # --- shared per-point MLP (Conv1d k=1 + folded BN + ReLU) -----------------
    # (C, B*N) orientation keeps the MXU lane dimension full (lanes = B*N).
    h = x_ref[...]                                            # bf16 (Cin_pad, B*N)
    for i, (off, cout) in enumerate(conv_meta):
        y = jnp.dot(w_refs[i][...], h, preferred_element_type=jnp.float32)
        y = y * conv_ss_ref[off:off + cout, 0:1] + conv_ss_ref[off:off + cout, 1:2]
        y = jnp.maximum(y, 0.0)
        # bf16 activations feed the next MXU op; keep the pooled layer in f32
        h = y if i == n_conv - 1 else y.astype(jnp.bfloat16)

    # --- global max-pool over each cloud's N points ---------------------------
    C = conv_meta[-1][1]
    if N_valid != N:   # static branch: mask zero-padded points so they never win
        pt = jax.lax.broadcasted_iota(jnp.int32, (C, B * N), 1) % N
        h = jnp.where(pt < N_valid, h, -jnp.inf)
    cols = [jnp.max(h[:, b * N:(b + 1) * N], axis=-1, keepdims=True)   # lane-aligned
            for b in range(B)]                                         # (C, 1) each
    pooled = cols[0] if B == 1 else jnp.concatenate(cols, axis=1)      # (C, B) f32

    # --- encoder FC stack + fc_resize, lane-dense (batch, features) -----------
    h = pooled
    for j, (off, cout, relu) in enumerate(fc_meta):
        w = w_refs[n_conv + j][...]                           # (Cin, Cout)
        if j == 0:
            # contract pooled's sublane (C) axis directly: (C,B) x (C,F) -> (B,F)
            # (f32 operands: most robust transposed-LHS matmul path)
            y = jax.lax.dot_general(h, w, (((0,), (0,)), ((), ())),
                                    preferred_element_type=jnp.float32)
        else:
            y = jnp.dot(h, w, preferred_element_type=jnp.float32)
        y = y * fc_ss_ref[0:1, off:off + cout] + fc_ss_ref[1:2, off:off + cout]
        if relu:
            y = jnp.maximum(y, 0.0)
        h = y.astype(jnp.bfloat16) if j < n_fc - 1 else y     # final logits stay f32

    out_ref[...] = h                                          # (B, 1) f32


def my_discriminator_forward(params, x):
    """Forward pass of myDiscriminator as a single fused pallas_call."""
    B, Cin, N = x.shape
    conv_w, fc_w = params["conv_w"], params["fc_w"]

    cin_pad = conv_w[0].shape[1]
    n_pad = 128 * pl.cdiv(N, 128)            # lane-tile aligned points per cloud

    # (B, Cin, N) -> (Cin_pad, B*N_pad) bf16 (tiny XLA relayout outside the kernel)
    xp = jnp.transpose(x, (1, 0, 2))
    xp = jnp.pad(xp, ((0, cin_pad - Cin), (0, 0), (0, n_pad - N)))
    xp = xp.reshape(cin_pad, B * n_pad).astype(jnp.bfloat16)

    # static per-layer metadata (offsets into the packed scale/shift arrays),
    # derived from weight shapes so it stays static under jit.
    conv_meta, off = [], 0
    for w in conv_w:
        conv_meta.append((off, w.shape[0]))
        off += w.shape[0]
    fc_meta, off = [], 0
    for j, w in enumerate(fc_w):
        cout = w.shape[1]
        fc_meta.append((off, cout, j < len(fc_w) - 1))   # final Linear(16,1): no ReLU
        off += 128 * pl.cdiv(cout, 128)                  # keep segments lane-aligned

    kernel = functools.partial(
        _fused_discriminator_kernel,
        B=B, N=n_pad, N_valid=N,
        conv_meta=tuple(conv_meta), fc_meta=tuple(fc_meta))

    vmem = pl.BlockSpec(memory_space=pltpu.MemorySpace.VMEM)  # whole array in VMEM
    flat_inputs = [xp, *conv_w, *fc_w, params["conv_ss"], params["fc_ss"]]

    # TODO(synk): for large pc_num/batch, tile the conv+pool stage over B*N with a
    # running-max accumulator (tile sized for v7x's 64 MiB VMEM, 2x larger on
    # v5e/v6e) and add a 'parallel' batch grid axis so both v7x TensorCores are
    # used; optionally store the two large FC weights as fp8 on v7x.
    return pl.pallas_call(
        kernel,
        out_shape=jax.ShapeDtypeStruct((B, 1), jnp.float32),
        in_specs=[vmem] * len(flat_inputs),
        out_specs=vmem,
    )(*flat_inputs)


# ----------------------------------------------------------------------------
# Parameter construction (deterministic, synthetic; BN folded for inference)
# ----------------------------------------------------------------------------
def init_params(key, mlp_dims, fc_dims, resize_dims=(256, 128, 16, 1)):
    """Weights stored MXU-ready: bf16, FC weights pre-transposed to (Cin, Cout),
    first conv Cin zero-padded to a sublane multiple.  BatchNorm folded into
    per-channel scale/shift and packed into two f32 arrays."""

    def nxt():
        nonlocal key
        key, sub = jax.random.split(key)
        return sub

    def bn_fold(c, bias):
        gamma = 0.5 + jax.random.uniform(nxt(), (c,), dtype=jnp.float32)
        beta = 0.1 * jax.random.normal(nxt(), (c,), dtype=jnp.float32)
        mean = 0.1 * jax.random.normal(nxt(), (c,), dtype=jnp.float32)
        var = 0.5 + jax.random.uniform(nxt(), (c,), dtype=jnp.float32)
        scale = gamma / jnp.sqrt(var + BN_EPS)
        shift = beta + scale * (bias - mean)
        return scale, shift                                    # (c,), (c,)

    # shared-MLP (Conv1d kernel=1 + BN + ReLU); pad first Cin (3 -> 8) once here
    conv_w, c_scales, c_shifts = [], [], []
    for i, (cin, cout) in enumerate(zip(mlp_dims[:-1], mlp_dims[1:])):
        w = 0.1 * jax.random.normal(nxt(), (cout, cin), dtype=jnp.float32)
        bias = 0.1 * jax.random.normal(nxt(), (cout,), dtype=jnp.float32)
        s, sh = bn_fold(cout, bias)
        if i == 0:
            w = jnp.pad(w, ((0, 0), (0, 8 * pl.cdiv(cin, 8) - cin)))   # exact (zeros)
        conv_w.append(w.astype(jnp.bfloat16))
        c_scales.append(s)
        c_shifts.append(sh)
    conv_ss = jnp.stack([jnp.concatenate(c_scales), jnp.concatenate(c_shifts)], axis=1)

    # encoder FC layers (Linear + BN + ReLU, last width 512) + fc_resize
    # (512->256->128->16 with BN+ReLU, then plain Linear(16, 1))
    dims = [mlp_dims[-1]] + list(fc_dims) + list(resize_dims)
    n_fc = len(dims) - 1
    fc_w, f_scales, f_shifts = [], [], []
    for j, (cin, cout) in enumerate(zip(dims[:-1], dims[1:])):
        w = 0.1 * jax.random.normal(nxt(), (cout, cin), dtype=jnp.float32)
        bias = 0.1 * jax.random.normal(nxt(), (cout,), dtype=jnp.float32)
        if j < n_fc - 1:
            s, sh = bn_fold(cout, bias)
        else:
            s, sh = jnp.ones((cout,), jnp.float32), bias
        wt = w.T                                              # (cin, cout), MXU-ready
        fc_w.append(wt if j == 0 else wt.astype(jnp.bfloat16))  # first FC stays f32
        seg = 128 * pl.cdiv(cout, 128)                        # lane-tile aligned segment
        f_scales.append(jnp.pad(s, (0, seg - cout)))
        f_shifts.append(jnp.pad(sh, (0, seg - cout)))
    fc_ss = jnp.stack([jnp.concatenate(f_scales), jnp.concatenate(f_shifts)], axis=0)

    return {"conv_w": conv_w, "fc_w": fc_w, "conv_ss": conv_ss, "fc_ss": fc_ss}


if __name__ == "__main__":
    key = jax.random.PRNGKey(0)
    k_param, k_data = jax.random.split(key)

    pc_num = 128                      # points per cloud (lane-aligned)
    mlp_dims = [3, 16, 32, 64]        # shared per-point MLP widths
    fc_dims = [128, 512]              # encoder FC widths (last must be 512)
    batch = 2

    params = init_params(k_param, mlp_dims, fc_dims)
    x = jax.random.normal(k_data, (batch, mlp_dims[0], pc_num), dtype=jnp.float32)

    fwd = jax.jit(my_discriminator_forward)
    out = jax.block_until_ready(fwd(params, x))
    assert out.shape == (batch, 1), out.shape
    print("KERNEL_OK")
</pallas_src>

<mosaic_0001>
module attributes {stable_mosaic.version = 11 : i64} {
  func.func @_fused_discriminator_kernel(%arg0: memref<8x256xbf16, #tpu.memory_space<vmem>>, %arg1: memref<16x8xbf16, #tpu.memory_space<vmem>>, %arg2: memref<32x16xbf16, #tpu.memory_space<vmem>>, %arg3: memref<64x32xbf16, #tpu.memory_space<vmem>>, %arg4: memref<64x128xf32, #tpu.memory_space<vmem>>, %arg5: memref<128x512xbf16, #tpu.memory_space<vmem>>, %arg6: memref<512x256xbf16, #tpu.memory_space<vmem>>, %arg7: memref<256x128xbf16, #tpu.memory_space<vmem>>, %arg8: memref<128x16xbf16, #tpu.memory_space<vmem>>, %arg9: memref<16x1xbf16, #tpu.memory_space<vmem>>, %arg10: memref<112x2xf32, #tpu.memory_space<vmem>>, %arg11: memref<2x1280xf32, #tpu.memory_space<vmem>>, %arg12: memref<2x1xf32, #tpu.memory_space<vmem>>) attributes {dimension_semantics = [], scalar_prefetch = 0 : i64, scratch_operands = 0 : i64, tpu.core_type = #tpu.core_type<tc>} {
    %c0 = arith.constant 0 : index
    %c0_0 = arith.constant 0 : index
    %0 = vector.load %arg0[%c0, %c0_0] : memref<8x256xbf16, #tpu.memory_space<vmem>>, vector<8x256xbf16>
    %c0_1 = arith.constant 0 : index
    %c0_2 = arith.constant 0 : index
    %1 = vector.load %arg1[%c0_1, %c0_2] : memref<16x8xbf16, #tpu.memory_space<vmem>>, vector<16x8xbf16>
    %cst = arith.constant dense<0.000000e+00> : vector<16x256xf32>
    %2 = tpu.matmul %1, %0, %cst {dimension_numbers = #tpu.dot_dimension_numbers<[1], [0], [0], [1], [0, 0, 1, 1], [], []>} : vector<16x8xbf16>, vector<8x256xbf16>, vector<16x256xf32> -> vector<16x256xf32>
    %c0_3 = arith.constant 0 : index
    %c0_4 = arith.constant 0 : index
    %3 = vector.load %arg10[%c0_3, %c0_4] : memref<112x2xf32, #tpu.memory_space<vmem>>, vector<16x1xf32>
    %4 = vector.broadcast %3 : vector<16x1xf32> to vector<16x256xf32>
    %5 = arith.mulf %2, %4 : vector<16x256xf32>
    %c0_5 = arith.constant 0 : index
    %c1 = arith.constant 1 : index
    %6 = vector.load %arg10[%c0_5, %c1] : memref<112x2xf32, #tpu.memory_space<vmem>>, vector<16x1xf32>
    %7 = vector.broadcast %6 : vector<16x1xf32> to vector<16x256xf32>
    %8 = arith.addf %5, %7 : vector<16x256xf32>
    %cst_6 = arith.constant 0.000000e+00 : f32
    %9 = vector.broadcast %cst_6 : f32 to vector<16x256xf32>
    %10 = arith.maximumf %8, %9 : vector<16x256xf32>
    %11 = arith.truncf %10 : vector<16x256xf32> to vector<16x256xbf16>
    %c0_7 = arith.constant 0 : index
    %c0_8 = arith.constant 0 : index
    %12 = vector.load %arg2[%c0_7, %c0_8] : memref<32x16xbf16, #tpu.memory_space<vmem>>, vector<32x16xbf16>
    %cst_9 = arith.constant dense<0.000000e+00> : vector<32x256xf32>
    %13 = tpu.matmul %12, %11, %cst_9 {dimension_numbers = #tpu.dot_dimension_numbers<[1], [0], [0], [1], [0, 0, 1, 1], [], []>} : vector<32x16xbf16>, vector<16x256xbf16>, vector<32x256xf32> -> vector<32x256xf32>
    %c16 = arith.constant 16 : index
    %c0_10 = arith.constant 0 : index
    %14 = vector.load %arg10[%c16, %c0_10] : memref<112x2xf32, #tpu.memory_space<vmem>>, vector<32x1xf32>
    %15 = vector.broadcast %14 : vector<32x1xf32> to vector<32x256xf32>
    %16 = arith.mulf %13, %15 : vector<32x256xf32>
    %c16_11 = arith.constant 16 : index
    %c1_12 = arith.constant 1 : index
    %17 = vector.load %arg10[%c16_11, %c1_12] : memref<112x2xf32, #tpu.memory_space<vmem>>, vector<32x1xf32>
    %18 = vector.broadcast %17 : vector<32x1xf32> to vector<32x256xf32>
    %19 = arith.addf %16, %18 : vector<32x256xf32>
    %cst_13 = arith.constant 0.000000e+00 : f32
    %20 = vector.broadcast %cst_13 : f32 to vector<32x256xf32>
    %21 = arith.maximumf %19, %20 : vector<32x256xf32>
    %22 = arith.truncf %21 : vector<32x256xf32> to vector<32x256xbf16>
    %c0_14 = arith.constant 0 : index
    %c0_15 = arith.constant 0 : index
    %23 = vector.load %arg3[%c0_14, %c0_15] : memref<64x32xbf16, #tpu.memory_space<vmem>>, vector<64x32xbf16>
    %cst_16 = arith.constant dense<0.000000e+00> : vector<64x256xf32>
    %24 = tpu.matmul %23, %22, %cst_16 {dimension_numbers = #tpu.dot_dimension_numbers<[1], [0], [0], [1], [0, 0, 1, 1], [], []>} : vector<64x32xbf16>, vector<32x256xbf16>, vector<64x256xf32> -> vector<64x256xf32>
    %c48 = arith.constant 48 : index
    %c0_17 = arith.constant 0 : index
    %25 = vector.load %arg10[%c48, %c0_17] : memref<112x2xf32, #tpu.memory_space<vmem>>, vector<64x1xf32>
    %26 = vector.broadcast %25 : vector<64x1xf32> to vector<64x256xf32>
    %27 = arith.mulf %24, %26 : vector<64x256xf32>
    %c48_18 = arith.constant 48 : index
    %c1_19 = arith.constant 1 : index
    %28 = vector.load %arg10[%c48_18, %c1_19] : memref<112x2xf32, #tpu.memory_space<vmem>>, vector<64x1xf32>
    %29 = vector.broadcast %28 : vector<64x1xf32> to vector<64x256xf32>
    %30 = arith.addf %27, %29 : vector<64x256xf32>
    %cst_20 = arith.constant 0.000000e+00 : f32
    %31 = vector.broadcast %cst_20 : f32 to vector<64x256xf32>
    %32 = arith.maximumf %30, %31 : vector<64x256xf32>
    %33 = vector.extract_strided_slice %32 {offsets = [0, 0], sizes = [64, 128], strides = [1, 1]} : vector<64x256xf32> to vector<64x128xf32>
    %cst_21 = arith.constant dense<0xFF800000> : vector<64xf32>
    %34 = vector.multi_reduction <maximumf>, %33, %cst_21 [1] : vector<64x128xf32> to vector<64xf32>
    %35 = vector.shape_cast %34 : vector<64xf32> to vector<64x1xf32>
    %36 = vector.extract_strided_slice %32 {offsets = [0, 128], sizes = [64, 128], strides = [1, 1]} : vector<64x256xf32> to vector<64x128xf32>
    %cst_22 = arith.constant dense<0xFF800000> : vector<64xf32>
    %37 = vector.multi_reduction <maximumf>, %36, %cst_22 [1] : vector<64x128xf32> to vector<64xf32>
    %38 = vector.shape_cast %37 : vector<64xf32> to vector<64x1xf32>
    %39 = tpu.concatenate %35, %38 in 1 : vector<64x1xf32>, vector<64x1xf32> -> vector<64x2xf32>
    %c0_23 = arith.constant 0 : index
    %c0_24 = arith.constant 0 : index
    %40 = vector.load %arg4[%c0_23, %c0_24] : memref<64x128xf32, #tpu.memory_space<vmem>>, vector<64x128xf32>
    %cst_25 = arith.constant dense<0.000000e+00> : vector<2x128xf32>
    %41 = tpu.matmul %39, %40, %cst_25 {dimension_numbers = #tpu.dot_dimension_numbers<[0], [0], [1], [1], [0, 1, 1, 1], [], []>} : vector<64x2xf32>, vector<64x128xf32>, vector<2x128xf32> -> vector<2x128xf32>
    %c0_26 = arith.constant 0 : index
    %c0_27 = arith.constant 0 : index
    %42 = vector.load %arg11[%c0_26, %c0_27] : memref<2x1280xf32, #tpu.memory_space<vmem>>, vector<1x128xf32>
    %43 = vector.broadcast %42 : vector<1x128xf32> to vector<2x128xf32>
    %44 = arith.mulf %41, %43 : vector<2x128xf32>
    %c1_28 = arith.constant 1 : index
    %c0_29 = arith.constant 0 : index
    %45 = vector.load %arg11[%c1_28, %c0_29] : memref<2x1280xf32, #tpu.memory_space<vmem>>, vector<1x128xf32>
    %46 = vector.broadcast %45 : vector<1x128xf32> to vector<2x128xf32>
    %47 = arith.addf %44, %46 : vector<2x128xf32>
    %cst_30 = arith.constant 0.000000e+00 : f32
    %48 = vector.broadcast %cst_30 : f32 to vector<2x128xf32>
    %49 = arith.maximumf %47, %48 : vector<2x128xf32>
    %50 = arith.truncf %49 : vector<2x128xf32> to vector<2x128xbf16>
    %c0_31 = arith.constant 0 : index
    %c0_32 = arith.constant 0 : index
    %51 = vector.load %arg5[%c0_31, %c0_32] : memref<128x512xbf16, #tpu.memory_space<vmem>>, vector<128x512xbf16>
    %cst_33 = arith.constant dense<0.000000e+00> : vector<2x512xf32>
    %52 = tpu.matmul %50, %51, %cst_33 {dimension_numbers = #tpu.dot_dimension_numbers<[1], [0], [0], [1], [0, 0, 1, 1], [], []>} : vector<2x128xbf16>, vector<128x512xbf16>, vector<2x512xf32> -> vector<2x512xf32>
    %c0_34 = arith.constant 0 : index
    %c128 = arith.constant 128 : index
    %53 = vector.load %arg11[%c0_34, %c128] : memref<2x1280xf32, #tpu.memory_space<vmem>>, vector<1x512xf32>
    %54 = vector.broadcast %53 : vector<1x512xf32> to vector<2x512xf32>
    %55 = arith.mulf %52, %54 : vector<2x512xf32>
    %c1_35 = arith.constant 1 : index
    %c128_36 = arith.constant 128 : index
    %56 = vector.load %arg11[%c1_35, %c128_36] : memref<2x1280xf32, #tpu.memory_space<vmem>>, vector<1x512xf32>
    %57 = vector.broadcast %56 : vector<1x512xf32> to vector<2x512xf32>
    %58 = arith.addf %55, %57 : vector<2x512xf32>
    %cst_37 = arith.constant 0.000000e+00 : f32
    %59 = vector.broadcast %cst_37 : f32 to vector<2x512xf32>
    %60 = arith.maximumf %58, %59 : vector<2x512xf32>
    %61 = arith.truncf %60 : vector<2x512xf32> to vector<2x512xbf16>
    %c0_38 = arith.constant 0 : index
    %c0_39 = arith.constant 0 : index
    %62 = vector.load %arg6[%c0_38, %c0_39] : memref<512x256xbf16, #tpu.memory_space<vmem>>, vector<512x256xbf16>
    %cst_40 = arith.constant dense<0.000000e+00> : vector<2x256xf32>
    %63 = tpu.matmul %61, %62, %cst_40 {dimension_numbers = #tpu.dot_dimension_numbers<[1], [0], [0], [1], [0, 0, 1, 1], [], []>} : vector<2x512xbf16>, vector<512x256xbf16>, vector<2x256xf32> -> vector<2x256xf32>
    %c0_41 = arith.constant 0 : index
    %c640 = arith.constant 640 : index
    %64 = vector.load %arg11[%c0_41, %c640] : memref<2x1280xf32, #tpu.memory_space<vmem>>, vector<1x256xf32>
    %65 = vector.broadcast %64 : vector<1x256xf32> to vector<2x256xf32>
    %66 = arith.mulf %63, %65 : vector<2x256xf32>
    %c1_42 = arith.constant 1 : index
    %c640_43 = arith.constant 640 : index
    %67 = vector.load %arg11[%c1_42, %c640_43] : memref<2x1280xf32, #tpu.memory_space<vmem>>, vector<1x256xf32>
    %68 = vector.broadcast %67 : vector<1x256xf32> to vector<2x256xf32>
    %69 = arith.addf %66, %68 : vector<2x256xf32>
    %cst_44 = arith.constant 0.000000e+00 : f32
    %70 = vector.broadcast %cst_44 : f32 to vector<2x256xf32>
    %71 = arith.maximumf %69, %70 : vector<2x256xf32>
    %72 = arith.truncf %71 : vector<2x256xf32> to vector<2x256xbf16>
    %c0_45 = arith.constant 0 : index
    %c0_46 = arith.constant 0 : index
    %73 = vector.load %arg7[%c0_45, %c0_46] : memref<256x128xbf16, #tpu.memory_space<vmem>>, vector<256x128xbf16>
    %cst_47 = arith.constant dense<0.000000e+00> : vector<2x128xf32>
    %74 = tpu.matmul %72, %73, %cst_47 {dimension_numbers = #tpu.dot_dimension_numbers<[1], [0], [0], [1], [0, 0, 1, 1], [], []>} : vector<2x256xbf16>, vector<256x128xbf16>, vector<2x128xf32> -> vector<2x128xf32>
    %c0_48 = arith.constant 0 : index
    %c896 = arith.constant 896 : index
    %75 = vector.load %arg11[%c0_48, %c896] : memref<2x1280xf32, #tpu.memory_space<vmem>>, vector<1x128xf32>
    %76 = vector.broadcast %75 : vector<1x128xf32> to vector<2x128xf32>
    %77 = arith.mulf %74, %76 : vector<2x128xf32>
    %c1_49 = arith.constant 1 : index
    %c896_50 = arith.constant 896 : index
    %78 = vector.load %arg11[%c1_49, %c896_50] : memref<2x1280xf32, #tpu.memory_space<vmem>>, vector<1x128xf32>
    %79 = vector.broadcast %78 : vector<1x128xf32> to vector<2x128xf32>
    %80 = arith.addf %77, %79 : vector<2x128xf32>
    %cst_51 = arith.constant 0.000000e+00 : f32
    %81 = vector.broadcast %cst_51 : f32 to vector<2x128xf32>
    %82 = arith.maximumf %80, %81 : vector<2x128xf32>
    %83 = arith.truncf %82 : vector<2x128xf32> to vector<2x128xbf16>
    %c0_52 = arith.constant 0 : index
    %c0_53 = arith.constant 0 : index
    %84 = vector.load %arg8[%c0_52, %c0_53] : memref<128x16xbf16, #tpu.memory_space<vmem>>, vector<128x16xbf16>
    %cst_54 = arith.constant dense<0.000000e+00> : vector<2x16xf32>
    %85 = tpu.matmul %83, %84, %cst_54 {dimension_numbers = #tpu.dot_dimension_numbers<[1], [0], [0], [1], [0, 0, 1, 1], [], []>} : vector<2x128xbf16>, vector<128x16xbf16>, vector<2x16xf32> -> vector<2x16xf32>
    %c0_55 = arith.constant 0 : index
    %c1024 = arith.constant 1024 : index
    %86 = vector.load %arg11[%c0_55, %c1024] : memref<2x1280xf32, #tpu.memory_space<vmem>>, vector<1x16xf32>
    %87 = vector.broadcast %86 : vector<1x16xf32> to vector<2x16xf32>
    %88 = arith.mulf %85, %87 : vector<2x16xf32>
    %c1_56 = arith.constant 1 : index
    %c1024_57 = arith.constant 1024 : index
    %89 = vector.load %arg11[%c1_56, %c1024_57] : memref<2x1280xf32, #tpu.memory_space<vmem>>, vector<1x16xf32>
    %90 = vector.broadcast %89 : vector<1x16xf32> to vector<2x16xf32>
    %91 = arith.addf %88, %90 : vector<2x16xf32>
    %cst_58 = arith.constant 0.000000e+00 : f32
    %92 = vector.broadcast %cst_58 : f32 to vector<2x16xf32>
    %93 = arith.maximumf %91, %92 : vector<2x16xf32>
    %94 = arith.truncf %93 : vector<2x16xf32> to vector<2x16xbf16>
    %c0_59 = arith.constant 0 : index
    %c0_60 = arith.constant 0 : index
    %95 = vector.load %arg9[%c0_59, %c0_60] : memref<16x1xbf16, #tpu.memory_space<vmem>>, vector<16x1xbf16>
    %cst_61 = arith.constant dense<0.000000e+00> : vector<2x1xf32>
    %96 = tpu.matmul %94, %95, %cst_61 {dimension_numbers = #tpu.dot_dimension_numbers<[1], [0], [0], [1], [0, 0, 1, 1], [], []>} : vector<2x16xbf16>, vector<16x1xbf16>, vector<2x1xf32> -> vector<2x1xf32>
    %c0_62 = arith.constant 0 : index
    %c1152 = arith.constant 1152 : index
    %97 = vector.load %arg11[%c0_62, %c1152] : memref<2x1280xf32, #tpu.memory_space<vmem>>, vector<1x1xf32>
    %98 = vector.broadcast %97 : vector<1x1xf32> to vector<2x1xf32>
    %99 = arith.mulf %96, %98 : vector<2x1xf32>
    %c1_63 = arith.constant 1 : index
    %c1152_64 = arith.constant 1152 : index
    %100 = vector.load %arg11[%c1_63, %c1152_64] : memref<2x1280xf32, #tpu.memory_space<vmem>>, vector<1x1xf32>
    %101 = vector.broadcast %100 : vector<1x1xf32> to vector<2x1xf32>
    %102 = arith.addf %99, %101 : vector<2x1xf32>
    %c0_65 = arith.constant 0 : index
    %c0_66 = arith.constant 0 : index
    %103 = vector.load %arg12[%c0_65, %c0_66] : memref<2x1xf32, #tpu.memory_space<vmem>>, vector<2x1xf32>
    tpu.vector_store %arg12[%c0_65, %c0_66], %102 {strides = array<i32>} : memref<2x1xf32, #tpu.memory_space<vmem>>, vector<2x1xf32>,
    return
  }
}

</mosaic_0001>

<llo_original>
// kernel: my_discriminator_forward.1
$region0: #{my_discriminator_forward.1}
  #allocation0 [shape = 'u32[]', space=smem, size = 0x4, offset = 0x4, fixed_abs, tag = 'smem constant byte address 0x4 - core index']
  #allocation1 [shape = 'u32[144,128]{1,0:T(1,128)}', space=vmem, size = 0x12000, scoped, tag = 'internal scratch']
  %s0 = inlined_call_operand.vmem [shape: bf16[8,256], index: 0, kind: input, shape index: {}]
  %s1 = inlined_call_operand.vmem [shape: bf16[16,8], index: 1, kind: input, shape index: {}]
  %s2 = inlined_call_operand.vmem [shape: bf16[32,16], index: 2, kind: input, shape index: {}]
  %s3 = inlined_call_operand.vmem [shape: bf16[64,32], index: 3, kind: input, shape index: {}]
  %s4 = inlined_call_operand.vmem [shape: f32[64,128], index: 4, kind: input, shape index: {}]
  %s5 = inlined_call_operand.vmem [shape: bf16[128,512], index: 5, kind: input, shape index: {}]
  %s6 = inlined_call_operand.hbm [shape: bf16[512,256], index: 6, kind: input, shape index: {}]
  %s7 = inlined_call_operand.hbm [shape: bf16[256,128], index: 7, kind: input, shape index: {}]
  %s8 = inlined_call_operand.vmem [shape: bf16[128,16], index: 8, kind: input, shape index: {}]
  %s9 = inlined_call_operand.vmem [shape: bf16[16,1], index: 9, kind: input, shape index: {}]
  %s10 = inlined_call_operand.vmem [shape: f32[112,2], index: 10, kind: input, shape index: {}]
  %s11 = inlined_call_operand.hbm [shape: f32[2,1280], index: 11, kind: input, shape index: {}]
  %s12 = inlined_call_operand.vmem [shape: f32[2,1], index: 12, kind: output, shape index: {}]
  %s13 = sld [smem:[#allocation0]]
  $region70: #{my_discriminator_forward.1} parent=0
    _
  %s15 = ssub.s32 1, %s13
  %s16 = scalar_select 0, %s15, %s13
  $region1: #{my_discriminator_forward.1} parent=0
    #allocation2 [shape = 'u8[262144]{0}', space=vmem, size = 0x40000, scoped, tag = 'input window, operand 6, single buffered']
    #allocation3 [shape = 's32[1]{0}', space=sflag, size = 0x4, scoped, tag = 'scoped memory for my_discriminator_forward.1']
    #allocation4 [shape = 'u8[65536]{0}', space=vmem, size = 0x10000, scoped, tag = 'input window, operand 7, single buffered']
    #allocation5 [shape = 's32[1]{0}', space=sflag, size = 0x4, scoped, tag = 'scoped memory for my_discriminator_forward.1']
    #allocation6 [shape = 'u8[10240]{0}', space=vmem, size = 0x2800, scoped, tag = 'input window, operand 11, single buffered']
    %17 = vsyncpa [#allocation3], 0
    %18 = vsyncpa [#allocation5], 0
    // Predicated region
    $region2: #{my_discriminator_forward.1} parent=1 // pred_check
      _
    $region3: #{my_discriminator_forward.1} parent=1 // pred_check_branch
      %20 = sbr.rel (0) target = $region5
    $region4: #{my_discriminator_forward.1} parent=1 // pred_region
      _
    $region5: #{my_discriminator_forward.1} parent=1 // pred_fallthru
      _
    // Predicated region
    $region6: #{my_discriminator_forward.1} parent=1 // pred_check
      _
    $region7: #{my_discriminator_forward.1} parent=1 // pred_check_branch
      %22 = sbr.rel (0) target = $region9
    $region8: #{my_discriminator_forward.1} parent=1 // pred_region
      _
    $region9: #{my_discriminator_forward.1} parent=1 // pred_fallthru
      _
    // Predicated region
    $region10: #{my_discriminator_forward.1} parent=1 // pred_check
      _
    $region11: #{my_discriminator_forward.1} parent=1 // pred_check_branch
      %24 = sbr.rel (0) target = $region13
    $region12: #{my_discriminator_forward.1} parent=1 // pred_region
      _
    $region13: #{my_discriminator_forward.1} parent=1 // pred_fallthru
      _
    // Predicated region
    $region14: #{my_discriminator_forward.1} parent=1 // pred_check
      _
    $region15: #{my_discriminator_forward.1} parent=1 // pred_check_branch
      %26 = sbr.rel (0) target = $region17
    $region16: #{my_discriminator_forward.1} parent=1 // pred_region
      _
    $region17: #{my_discriminator_forward.1} parent=1 // pred_fallthru
      _
    // Predicated region
    $region18: #{my_discriminator_forward.1} parent=1 // pred_check
      _
    $region19: #{my_discriminator_forward.1} parent=1 // pred_check_branch
      %28 = sbr.rel (0) target = $region21
    $region20: #{my_discriminator_forward.1} parent=1 // pred_region
      _
    $region21: #{my_discriminator_forward.1} parent=1 // pred_fallthru
      _
    // Predicated region
    $region22: #{my_discriminator_forward.1} parent=1 // pred_check
      _
    $region23: #{my_discriminator_forward.1} parent=1 // pred_check_branch
      %30 = sbr.rel (0) target = $region25
    $region24: #{my_discriminator_forward.1} parent=1 // pred_region
      _
    $region25: #{my_discriminator_forward.1} parent=1 // pred_fallthru
      _
    // Predicated region
    $region26: #{my_discriminator_forward.1} parent=1 // pred_check
      _
    $region27: #{my_discriminator_forward.1} parent=1 // pred_check_branch
      %32 = sbr.rel (0) target = $region29
    $region28: #{my_discriminator_forward.1} parent=1 // pred_region
      %s34 = ssub.s32 8192, 8192
      %35 = vsyncadd [#allocation3], %s34
      %s36 = sshll.u32 [#allocation2], 4
      %s37 = int_to_ptr.vmem [resolvable:$true] %s36
      %42 = dma.hbm_to_vmem [thread:$0]  %s6, 8192, %s37, [#allocation3], 128, 128, 8
    $region29: #{my_discriminator_forward.1} parent=1 // pred_fallthru
      _
    // Predicated region
    $region30: #{my_discriminator_forward.1} parent=1 // pred_check
      _
    $region31: #{my_discriminator_forward.1} parent=1 // pred_check_branch
      %44 = sbr.rel (0) target = $region33
    $region32: #{my_discriminator_forward.1} parent=1 // pred_region
      %s46 = ssub.s32 2048, 2048
      %47 = vsyncadd [#allocation5], %s46
      %s48 = sshll.u32 [#allocation4], 4
      %s49 = int_to_ptr.vmem [resolvable:$true] %s48
      %54 = dma.hbm_to_vmem [thread:$0]  %s7, 2048, %s49, [#allocation5], 64, 64, 4
    $region33: #{my_discriminator_forward.1} parent=1 // pred_fallthru
      _
    // Predicated region
    $region34: #{my_discriminator_forward.1} parent=1 // pred_check
      _
    $region35: #{my_discriminator_forward.1} parent=1 // pred_check_branch
      %56 = sbr.rel (0) target = $region37
    $region36: #{my_discriminator_forward.1} parent=1 // pred_region
      _
    $region37: #{my_discriminator_forward.1} parent=1 // pred_fallthru
      _
    // Predicated region
    $region38: #{my_discriminator_forward.1} parent=1 // pred_check
      _
    $region39: #{my_discriminator_forward.1} parent=1 // pred_check_branch
      %58 = sbr.rel (0) target = $region41
    $region40: #{my_discriminator_forward.1} parent=1 // pred_region
      _
    $region41: #{my_discriminator_forward.1} parent=1 // pred_fallthru
      _
    // Predicated region
    $region42: #{my_discriminator_forward.1} parent=1 // pred_check
      _
    $region43: #{my_discriminator_forward.1} parent=1 // pred_check_branch
      %60 = sbr.rel (0) target = $region45
    $region44: #{my_discriminator_forward.1} parent=1 // pred_region
      _
    $region45: #{my_discriminator_forward.1} parent=1 // pred_fallthru
      _
    // Predicated region
    $region46: #{my_discriminator_forward.1} parent=1 // pred_check
      _
    $region47: #{my_discriminator_forward.1} parent=1 // pred_check_branch
      %62 = sbr.rel (0) target = $region49
    $region48: #{my_discriminator_forward.1} parent=1 // pred_region
      %s64 = ssub.s32 320, 320
      %65 = vsyncadd [#allocation5], %s64
      %s67 = sshll.u32 [#allocation6], 4
      %s68 = int_to_ptr.vmem [resolvable:$true] %s67
      %70 = dma.hbm_to_vmem [thread:$0]  %s11, 320, %s68, [#allocation5]
    $region49: #{my_discriminator_forward.1} parent=1 // pred_fallthru
      _
    // Predicated region
    $region50: #{my_discriminator_forward.1} parent=1 // pred_check
      _
    $region51: #{my_discriminator_forward.1} parent=1 // pred_check_branch
      %72 = sbr.rel (0) target = $region53
    $region52: #{my_discriminator_forward.1} parent=1 // pred_region
      %73 = dma.done [#allocation3], 8192
    $region53: #{my_discriminator_forward.1} parent=1 // pred_fallthru
      _
    // Predicated region
    $region54: #{my_discriminator_forward.1} parent=1 // pred_check
      _
    $region55: #{my_discriminator_forward.1} parent=1 // pred_check_branch
      %75 = sbr.rel (0) target = $region57
    $region56: #{my_discriminator_forward.1} parent=1 // pred_region
      %76 = dma.done [#allocation5], 2048
    $region57: #{my_discriminator_forward.1} parent=1 // pred_fallthru
      _
    // Predicated region
    $region58: #{my_discriminator_forward.1} parent=1 // pred_check
      _
    $region59: #{my_discriminator_forward.1} parent=1 // pred_check_branch
      %78 = sbr.rel (0) target = $region61
    $region60: #{my_discriminator_forward.1} parent=1 // pred_region
      %79 = dma.done [#allocation5], 320
    $region61: #{my_discriminator_forward.1} parent=1 // pred_fallthru
      _
    %v81 = vld [vmem:[%s0] sm:$0xff]
    %v82 = vld [vmem:[%s1] sm:$0xf]
    %v83 = vld [vmem:[%s1 + $0x4] sm:$0xf]
    %v86 = vunpack.c.l.b16 %v82
    %v87 = vunpack.c.l.b16 %v83
    %v88 = vpack.c.b16 %v87, %v86
    %v90 = vunpack.c.l.b16 %v81
    %v91 = vunpack.c.h.b16 %v81
    %v92 = vpack.c.b16 %v90, %v90
    %v93 = vpack.c.b16 %v91, %v91
    %vm94 = vcmask 64512
    %v96 = vsel %vm94, %v88, 0
    %vm98 = vcmask 1043456
    %v100 = vsel %vm98, %v92, 0
    %v103 = vsel %vm98, %v93, 0
    %105 = vmatprep.subr.bf16.mxu0 %v103
    %106 = vmatpush1.bf16.msra.mxu0 %v100
    %107 = vmatprep.subr.bf16.mxu0 0
    %108 = vmatpush1.bf16.msra.mxu0 0
    %109 = vmatprep.subr.bf16.mxu0 0
    %110 = vmatpush1.bf16.msra.mxu0 0
    %111 = vmatprep.subr.bf16.mxu0 0
    %112 = vmatpush1.bf16.msra.mxu0 0
    %113 = vmatprep.subr.bf16.mxu0 0
    %114 = vmatpush1.bf16.msra.mxu0 0
    %115 = vmatprep.subr.bf16.mxu0 0
    %116 = vmatpush1.bf16.msra.mxu0 0
    %117 = vmatprep.subr.bf16.mxu0 0
    %118 = vmatpush1.bf16.msra.mxu0 0
    %119 = vmatprep.subr.bf16.mxu0 0
    %120 = vmatpush1.bf16.msra.mxu0 0
    %121 = vmatprep.subr.bf16.mxu0 0
    %122 = vmatpush1.bf16.msra.mxu0 0
    %123 = vmatprep.subr.bf16.mxu0 0
    %124 = vmatpush1.bf16.msra.mxu0 0
    %125 = vmatprep.subr.bf16.mxu0 0
    %126 = vmatpush1.bf16.msra.mxu0 0
    %127 = vmatprep.subr.bf16.mxu0 0
    %128 = vmatpush1.bf16.msra.mxu0 0
    %129 = vmatprep.subr.bf16.mxu0 0
    %130 = vmatpush1.bf16.msra.mxu0 0
    %131 = vmatprep.subr.bf16.mxu0 0
    %132 = vmatpush1.bf16.msra.mxu0 0
    %133 = vmatprep.subr.bf16.mxu0 0
    %134 = vmatpush1.bf16.msra.mxu0 0
    %135 = vmatprep.subr.bf16.mxu0 0
    %136 = vmatpush1.bf16.msra.mxu0 0
    %137 = vmatprep.mubr.bf16.mxu0 0
    %138 = vmatmul.mubr.bf16.gmra.mrb[0].mxu0 %v96
    %v139 = vpop.f32.mrb[0].mxu0
    %v140 = vadd.f32 0.0, %v139
    %v141 = vpop.f32.mrb[0].mxu0
    %v142 = vadd.f32 0.0, %v141
    %v143 = vpop.f32.mrb[0].mxu0
    %v144 = vadd.f32 0.0, %v143
    %v145 = vpop.f32.mrb[0].mxu0
    %v146 = vadd.f32 0.0, %v145
    %147 = vdwg.mxu0
    %v148 = vld [vmem:[%s10] sm:$0xff]
    %v149 = vld [vmem:[%s10 + $0x8] sm:$0xff]
    %151 = vset.pattern.permute.xlu0 0
    %152 = vperm.xlu0 %151, %v148
    %v153 = vpop.permute.xlu0 %152
    %156 = vset.pattern.permute.xlu0 0
    %157 = vperm.xlu0 %156, %v149
    %v158 = vpop.permute.xlu0 %157
    %v160 = vmul.f32 %v140, %v153
    %v161 = vmul.f32 %v142, %v153
    %v162 = vmul.f32 %v144, %v158
    %v163 = vmul.f32 %v146, %v158
    %164 = vset.pattern.permute.xlu0 1
    %165 = vperm.xlu0 %164, %v148
    %v166 = vpop.permute.xlu0 %165
    %168 = vset.pattern.permute.xlu0 1
    %169 = vperm.xlu0 %168, %v149
    %v170 = vpop.permute.xlu0 %169
    %v172 = vadd.f32 %v160, %v166
    %v173 = vadd.f32 %v161, %v166
    %v174 = vadd.f32 %v162, %v170
    %v175 = vadd.f32 %v163, %v170
    %v176 = vmax.f32 %v172, 0.0
    %v177 = vmax.f32 %v173, 0.0
    %v178 = vmax.f32 %v174, 0.0
    %v179 = vmax.f32 %v175, 0.0
    %v180 = vpack.c.bf16 %v178, %v176
    %v181 = vpack.c.bf16 %v179, %v177
    %v182 = vld [vmem:[%s2] sm:$0xf]
    %v183 = vld [vmem:[%s2 + $0x4] sm:$0xf]
    %v184 = vld [vmem:[%s2 + $0x8] sm:$0xf]
    %v185 = vld [vmem:[%s2 + $0xc] sm:$0xf]
    %v190 = vunpack.c.l.b16 %v182
    %v191 = vunpack.c.l.b16 %v183
    %v192 = vunpack.c.l.b16 %v184
    %v193 = vunpack.c.l.b16 %v185
    %v194 = vpack.c.b16 %v191, %v190
    %v195 = vpack.c.b16 %v193, %v192
    %vm196 = vcmask 130048
    %v198 = vsel %vm196, %v194, 0
    %v201 = vsel %vm196, %v195, 0
    %203 = vmatprep.subr.bf16.mxu0 %v181
    %204 = vmatpush1.bf16.msra.mxu0 %v180
    %205 = vmatprep.subr.bf16.mxu0 0
    %206 = vmatpush1.bf16.msra.mxu0 0
    %207 = vmatprep.subr.bf16.mxu0 0
    %208 = vmatpush1.bf16.msra.mxu0 0
    %209 = vmatprep.subr.bf16.mxu0 0
    %210 = vmatpush1.bf16.msra.mxu0 0
    %211 = vmatprep.subr.bf16.mxu0 0
    %212 = vmatpush1.bf16.msra.mxu0 0
    %213 = vmatprep.subr.bf16.mxu0 0
    %214 = vmatpush1.bf16.msra.mxu0 0
    %215 = vmatprep.subr.bf16.mxu0 0
    %216 = vmatpush1.bf16.msra.mxu0 0
    %217 = vmatprep.subr.bf16.mxu0 0
    %218 = vmatpush1.bf16.msra.mxu0 0
    %219 = vmatprep.subr.bf16.mxu0 0
    %220 = vmatpush1.bf16.msra.mxu0 0
    %221 = vmatprep.subr.bf16.mxu0 0
    %222 = vmatpush1.bf16.msra.mxu0 0
    %223 = vmatprep.subr.bf16.mxu0 0
    %224 = vmatpush1.bf16.msra.mxu0 0
    %225 = vmatprep.subr.bf16.mxu0 0
    %226 = vmatpush1.bf16.msra.mxu0 0
    %227 = vmatprep.subr.bf16.mxu0 0
    %228 = vmatpush1.bf16.msra.mxu0 0
    %229 = vmatprep.subr.bf16.mxu0 0
    %230 = vmatpush1.bf16.msra.mxu0 0
    %231 = vmatprep.subr.bf16.mxu0 0
    %232 = vmatpush1.bf16.msra.mxu0 0
    %233 = vmatprep.subr.bf16.mxu0 0
    %234 = vmatpush1.bf16.msra.mxu0 0
    %235 = vmatprep.mubr.bf16.mxu0 0
    %236 = vmatmul.mubr.bf16.gmra.mrb[0].mxu0 %v198
    %v237 = vpop.f32.mrb[0].mxu0
    %v238 = vadd.f32 0.0, %v237
    %v239 = vpop.f32.mrb[0].mxu0
    %v240 = vadd.f32 0.0, %v239
    %v241 = vpop.f32.mrb[0].mxu0
    %v242 = vadd.f32 0.0, %v241
    %v243 = vpop.f32.mrb[0].mxu0
    %v244 = vadd.f32 0.0, %v243
    %245 = vmatprep.mubr.bf16.mxu0 0
    %246 = vmatmul.mubr.bf16.gmra.mrb[0].mxu0 %v201
    %v247 = vpop.f32.mrb[0].mxu0
    %v248 = vadd.f32 0.0, %v247
    %v249 = vpop.f32.mrb[0].mxu0
    %v250 = vadd.f32 0.0, %v249
    %v251 = vpop.f32.mrb[0].mxu0
    %v252 = vadd.f32 0.0, %v251
    %v253 = vpop.f32.mrb[0].mxu0
    %v254 = vadd.f32 0.0, %v253
    %255 = vdwg.mxu0
    %v256 = vld [vmem:[%s10 + $0x10] sm:$0xff]
    %v257 = vld [vmem:[%s10 + $0x18] sm:$0xff]
    %v258 = vld [vmem:[%s10 + $0x20] sm:$0xff]
    %v259 = vld [vmem:[%s10 + $0x28] sm:$0xff]
    %261 = vset.pattern.permute.xlu0 0
    %262 = vperm.xlu0 %261, %v256
    %v263 = vpop.permute.xlu0 %262
    %266 = vset.pattern.permute.xlu0 0
    %267 = vperm.xlu0 %266, %v257
    %v268 = vpop.permute.xlu0 %267
    %271 = vset.pattern.permute.xlu0 0
    %272 = vperm.xlu0 %271, %v258
    %v273 = vpop.permute.xlu0 %272
    %276 = vset.pattern.permute.xlu0 0
    %277 = vperm.xlu0 %276, %v259
    %v278 = vpop.permute.xlu0 %277
    %v280 = vmul.f32 %v238, %v263
    %v281 = vmul.f32 %v240, %v263
    %v282 = vmul.f32 %v242, %v268
    %v283 = vmul.f32 %v244, %v268
    %v284 = vmul.f32 %v248, %v273
    %v285 = vmul.f32 %v250, %v273
    %v286 = vmul.f32 %v252, %v278
    %v287 = vmul.f32 %v254, %v278
    %288 = vset.pattern.permute.xlu0 1
    %289 = vperm.xlu0 %288, %v256
    %v290 = vpop.permute.xlu0 %289
    %292 = vset.pattern.permute.xlu0 1
    %293 = vperm.xlu0 %292, %v257
    %v294 = vpop.permute.xlu0 %293
    %296 = vset.pattern.permute.xlu0 1
    %297 = vperm.xlu0 %296, %v258
    %v298 = vpop.permute.xlu0 %297
    %300 = vset.pattern.permute.xlu0 1
    %301 = vperm.xlu0 %300, %v259
    %v302 = vpop.permute.xlu0 %301
    %v304 = vadd.f32 %v280, %v290
    %v305 = vadd.f32 %v281, %v290
    %v306 = vadd.f32 %v282, %v294
    %v307 = vadd.f32 %v283, %v294
    %v308 = vadd.f32 %v284, %v298
    %v309 = vadd.f32 %v285, %v298
    %v310 = vadd.f32 %v286, %v302
    %v311 = vadd.f32 %v287, %v302
    %v312 = vmax.f32 %v304, 0.0
    %v313 = vmax.f32 %v305, 0.0
    %v314 = vmax.f32 %v306, 0.0
    %v315 = vmax.f32 %v307, 0.0
    %v316 = vmax.f32 %v308, 0.0
    %v317 = vmax.f32 %v309, 0.0
    %v318 = vmax.f32 %v310, 0.0
    %v319 = vmax.f32 %v311, 0.0
    %v320 = vpack.c.bf16 %v314, %v312
    %v321 = vpack.c.bf16 %v315, %v313
    %v322 = vpack.c.bf16 %v318, %v316
    %v323 = vpack.c.bf16 %v319, %v317
    %v324 = vld [vmem:[%s3] sm:$0xf]
    %v325 = vld [vmem:[%s3 + $0x4] sm:$0xf]
    %v326 = vld [vmem:[%s3 + $0x8] sm:$0xf]
    %v327 = vld [vmem:[%s3 + $0xc] sm:$0xf]
    %v328 = vld [vmem:[%s3 + $0x10] sm:$0xf]
    %v329 = vld [vmem:[%s3 + $0x14] sm:$0xf]
    %v330 = vld [vmem:[%s3 + $0x18] sm:$0xf]
    %v331 = vld [vmem:[%s3 + $0x1c] sm:$0xf]
    %v340 = vunpack.c.l.b16 %v324
    %v341 = vunpack.c.l.b16 %v325
    %v342 = vunpack.c.l.b16 %v326
    %v343 = vunpack.c.l.b16 %v327
    %v344 = vunpack.c.l.b16 %v328
    %v345 = vunpack.c.l.b16 %v329
    %v346 = vunpack.c.l.b16 %v330
    %v347 = vunpack.c.l.b16 %v331
    %v348 = vpack.c.b16 %v341, %v340
    %v349 = vpack.c.b16 %v343, %v342
    %v350 = vpack.c.b16 %v345, %v344
    %v351 = vpack.c.b16 %v347, %v346
    %vm352 = vcmask 261120
    %v354 = vsel %vm352, %v348, 0
    %v357 = vsel %vm352, %v349, 0
    %v360 = vsel %vm352, %v350, 0
    %v363 = vsel %vm352, %v351, 0
    %365 = vmatprep.subr.bf16.mxu0 %v321
    %366 = vmatpush1.bf16.msra.mxu0 %v320
    %367 = vmatprep.subr.bf16.mxu0 %v323
    %368 = vmatpush1.bf16.msra.mxu0 %v322
    %369 = vmatprep.subr.bf16.mxu0 0
    %370 = vmatpush1.bf16.msra.mxu0 0
    %371 = vmatprep.subr.bf16.mxu0 0
    %372 = vmatpush1.bf16.msra.mxu0 0
    %373 = vmatprep.subr.bf16.mxu0 0
    %374 = vmatpush1.bf16.msra.mxu0 0
    %375 = vmatprep.subr.bf16.mxu0 0
    %376 = vmatpush1.bf16.msra.mxu0 0
    %377 = vmatprep.subr.bf16.mxu0 0
    %378 = vmatpush1.bf16.msra.mxu0 0
    %379 = vmatprep.subr.bf16.mxu0 0
    %380 = vmatpush1.bf16.msra.mxu0 0
    %381 = vmatprep.subr.bf16.mxu0 0
    %382 = vmatpush1.bf16.msra.mxu0 0
    %383 = vmatprep.subr.bf16.mxu0 0
    %384 = vmatpush1.bf16.msra.mxu0 0
    %385 = vmatprep.subr.bf16.mxu0 0
    %386 = vmatpush1.bf16.msra.mxu0 0
    %387 = vmatprep.subr.bf16.mxu0 0
    %388 = vmatpush1.bf16.msra.mxu0 0
    %389 = vmatprep.subr.bf16.mxu0 0
    %390 = vmatpush1.bf16.msra.mxu0 0
    %391 = vmatprep.subr.bf16.mxu0 0
    %392 = vmatpush1.bf16.msra.mxu0 0
    %393 = vmatprep.subr.bf16.mxu0 0
    %394 = vmatpush1.bf16.msra.mxu0 0
    %395 = vmatprep.subr.bf16.mxu0 0
    %396 = vmatpush1.bf16.msra.mxu0 0
    %397 = vmatprep.mubr.bf16.mxu0 0
    %398 = vmatmul.mubr.bf16.gmra.mrb[0].mxu0 %v354
    %v399 = vpop.f32.mrb[0].mxu0
    %v400 = vadd.f32 0.0, %v399
    %v401 = vpop.f32.mrb[0].mxu0
    %v402 = vadd.f32 0.0, %v401
    %v403 = vpop.f32.mrb[0].mxu0
    %v404 = vadd.f32 0.0, %v403
    %v405 = vpop.f32.mrb[0].mxu0
    %v406 = vadd.f32 0.0, %v405
    %407 = vmatprep.mubr.bf16.mxu0 0
    %408 = vmatmul.mubr.bf16.gmra.mrb[0].mxu0 %v357
    %v409 = vpop.f32.mrb[0].mxu0
    %v410 = vadd.f32 0.0, %v409
    %v411 = vpop.f32.mrb[0].mxu0
    %v412 = vadd.f32 0.0, %v411
    %v413 = vpop.f32.mrb[0].mxu0
    %v414 = vadd.f32 0.0, %v413
    %v415 = vpop.f32.mrb[0].mxu0
    %v416 = vadd.f32 0.0, %v415
    %417 = vmatprep.mubr.bf16.mxu0 0
    %418 = vmatmul.mubr.bf16.gmra.mrb[0].mxu0 %v360
    %v419 = vpop.f32.mrb[0].mxu0
    %v420 = vadd.f32 0.0, %v419
    %v421 = vpop.f32.mrb[0].mxu0
    %v422 = vadd.f32 0.0, %v421
    %v423 = vpop.f32.mrb[0].mxu0
    %v424 = vadd.f32 0.0, %v423
    %v425 = vpop.f32.mrb[0].mxu0
    %v426 = vadd.f32 0.0, %v425
    %427 = vmatprep.mubr.bf16.mxu0 0
    %428 = vmatmul.mubr.bf16.gmra.mrb[0].mxu0 %v363
    %v429 = vpop.f32.mrb[0].mxu0
    %v430 = vadd.f32 0.0, %v429
    %v431 = vpop.f32.mrb[0].mxu0
    %v432 = vadd.f32 0.0, %v431
    %v433 = vpop.f32.mrb[0].mxu0
    %v434 = vadd.f32 0.0, %v433
    %v435 = vpop.f32.mrb[0].mxu0
    %v436 = vadd.f32 0.0, %v435
    %437 = vdwg.mxu0
    %v438 = vld [vmem:[%s10 + $0x30] sm:$0xff]
    %v439 = vld [vmem:[%s10 + $0x38] sm:$0xff]
    %v440 = vld [vmem:[%s10 + $0x40] sm:$0xff]
    %v441 = vld [vmem:[%s10 + $0x48] sm:$0xff]
    %v442 = vld [vmem:[%s10 + $0x50] sm:$0xff]
    %v443 = vld [vmem:[%s10 + $0x58] sm:$0xff]
    %v444 = vld [vmem:[%s10 + $0x60] sm:$0xff]
    %v445 = vld [vmem:[%s10 + $0x68] sm:$0xff]
    %447 = vset.pattern.permute.xlu0 0
    %448 = vperm.xlu0 %447, %v438
    %v449 = vpop.permute.xlu0 %448
    %452 = vset.pattern.permute.xlu0 0
    %453 = vperm.xlu0 %452, %v439
    %v454 = vpop.permute.xlu0 %453
    %457 = vset.pattern.permute.xlu0 0
    %458 = vperm.xlu0 %457, %v440
    %v459 = vpop.permute.xlu0 %458
    %462 = vset.pattern.permute.xlu0 0
    %463 = vperm.xlu0 %462, %v441
    %v464 = vpop.permute.xlu0 %463
    %467 = vset.pattern.permute.xlu0 0
    %468 = vperm.xlu0 %467, %v442
    %v469 = vpop.permute.xlu0 %468
    %472 = vset.pattern.permute.xlu0 0
    %473 = vperm.xlu0 %472, %v443
    %v474 = vpop.permute.xlu0 %473
    %477 = vset.pattern.permute.xlu0 0
    %478 = vperm.xlu0 %477, %v444
    %v479 = vpop.permute.xlu0 %478
    %482 = vset.pattern.permute.xlu0 0
    %483 = vperm.xlu0 %482, %v445
    %v484 = vpop.permute.xlu0 %483
    %v486 = vmul.f32 %v400, %v449
    %v487 = vmul.f32 %v402, %v449
    %v488 = vmul.f32 %v404, %v454
    %v489 = vmul.f32 %v406, %v454
    %v490 = vmul.f32 %v410, %v459
    %v491 = vmul.f32 %v412, %v459
    %v492 = vmul.f32 %v414, %v464
    %v493 = vmul.f32 %v416, %v464
    %v494 = vmul.f32 %v420, %v469
    %v495 = vmul.f32 %v422, %v469
    %v496 = vmul.f32 %v424, %v474
    %v497 = vmul.f32 %v426, %v474
    %v498 = vmul.f32 %v430, %v479
    %v499 = vmul.f32 %v432, %v479
    %v500 = vmul.f32 %v434, %v484
    %v501 = vmul.f32 %v436, %v484
    %502 = vset.pattern.permute.xlu0 1
    %503 = vperm.xlu0 %502, %v438
    %v504 = vpop.permute.xlu0 %503
    %506 = vset.pattern.permute.xlu0 1
    %507 = vperm.xlu0 %506, %v439
    %v508 = vpop.permute.xlu0 %507
    %510 = vset.pattern.permute.xlu0 1
    %511 = vperm.xlu0 %510, %v440
    %v512 = vpop.permute.xlu0 %511
    %514 = vset.pattern.permute.xlu0 1
    %515 = vperm.xlu0 %514, %v441
    %v516 = vpop.permute.xlu0 %515
    %518 = vset.pattern.permute.xlu0 1
    %519 = vperm.xlu0 %518, %v442
    %v520 = vpop.permute.xlu0 %519
    %522 = vset.pattern.permute.xlu0 1
    %523 = vperm.xlu0 %522, %v443
    %v524 = vpop.permute.xlu0 %523
    %526 = vset.pattern.permute.xlu0 1
    %527 = vperm.xlu0 %526, %v444
    %v528 = vpop.permute.xlu0 %527
    %530 = vset.pattern.permute.xlu0 1
    %531 = vperm.xlu0 %530, %v445
    %v532 = vpop.permute.xlu0 %531
    %v534 = vadd.f32 %v486, %v504
    %v535 = vadd.f32 %v487, %v504
    %v536 = vadd.f32 %v488, %v508
    %v537 = vadd.f32 %v489, %v508
    %v538 = vadd.f32 %v490, %v512
    %v539 = vadd.f32 %v491, %v512
    %v540 = vadd.f32 %v492, %v516
    %v541 = vadd.f32 %v493, %v516
    %v542 = vadd.f32 %v494, %v520
    %v543 = vadd.f32 %v495, %v520
    %v544 = vadd.f32 %v496, %v524
    %v545 = vadd.f32 %v497, %v524
    %v546 = vadd.f32 %v498, %v528
    %v547 = vadd.f32 %v499, %v528
    %v548 = vadd.f32 %v500, %v532
    %v549 = vadd.f32 %v501, %v532
    %v550 = vmax.f32 %v534, 0.0
    %v551 = vmax.f32 %v535, 0.0
    %v552 = vmax.f32 %v536, 0.0
    %v553 = vmax.f32 %v537, 0.0
    %v554 = vmax.f32 %v538, 0.0
    %v555 = vmax.f32 %v539, 0.0
    %v556 = vmax.f32 %v540, 0.0
    %v557 = vmax.f32 %v541, 0.0
    %v558 = vmax.f32 %v542, 0.0
    %v559 = vmax.f32 %v543, 0.0
    %v560 = vmax.f32 %v544, 0.0
    %v561 = vmax.f32 %v545, 0.0
    %v562 = vmax.f32 %v546, 0.0
    %v563 = vmax.f32 %v547, 0.0
    %v564 = vmax.f32 %v548, 0.0
    %v565 = vmax.f32 %v549, 0.0
    %566 = vmax.xlane.f32.xlu0 %v550
    %v567 = vpop.xlane.xlu0 %566
    %568 = vmax.xlane.f32.xlu0 %v552
    %v569 = vpop.xlane.xlu0 %568
    %570 = vmax.xlane.f32.xlu0 %v554
    %v571 = vpop.xlane.xlu0 %570
    %572 = vmax.xlane.f32.xlu0 %v556
    %v573 = vpop.xlane.xlu0 %572
    %574 = vmax.xlane.f32.xlu0 %v558
    %v575 = vpop.xlane.xlu0 %574
    %576 = vmax.xlane.f32.xlu0 %v560
    %v577 = vpop.xlane.xlu0 %576
    %578 = vmax.xlane.f32.xlu0 %v562
    %v579 = vpop.xlane.xlu0 %578
    %580 = vmax.xlane.f32.xlu0 %v564
    %v581 = vpop.xlane.xlu0 %580
    %582 = vmax.xlane.f32.xlu0 %v551
    %v583 = vpop.xlane.xlu0 %582
    %584 = vmax.xlane.f32.xlu0 %v553
    %v585 = vpop.xlane.xlu0 %584
    %586 = vmax.xlane.f32.xlu0 %v555
    %v587 = vpop.xlane.xlu0 %586
    %588 = vmax.xlane.f32.xlu0 %v557
    %v589 = vpop.xlane.xlu0 %588
    %590 = vmax.xlane.f32.xlu0 %v559
    %v591 = vpop.xlane.xlu0 %590
    %592 = vmax.xlane.f32.xlu0 %v561
    %v593 = vpop.xlane.xlu0 %592
    %594 = vmax.xlane.f32.xlu0 %v563
    %v595 = vpop.xlane.xlu0 %594
    %596 = vmax.xlane.f32.xlu0 %v565
    %v597 = vpop.xlane.xlu0 %596
    %vm598 = vcmask 7168
    %v599 = vsel %vm598, %v567, %v583
    %v600 = vsel %vm598, %v569, %v585
    %v601 = vsel %vm598, %v571, %v587
    %v602 = vsel %vm598, %v573, %v589
    %v603 = vsel %vm598, %v575, %v591
    %v604 = vsel %vm598, %v577, %v593
    %v605 = vsel %vm598, %v579, %v595
    %v606 = vsel %vm598, %v581, %v597
    %v607 = vld [vmem:[%s4] sm:$0xff]
    %v608 = vld [vmem:[%s4 + $0x8] sm:$0xff]
    %v609 = vld [vmem:[%s4 + $0x10] sm:$0xff]
    %v610 = vld [vmem:[%s4 + $0x18] sm:$0xff]
    %v611 = vld [vmem:[%s4 + $0x20] sm:$0xff]
    %v612 = vld [vmem:[%s4 + $0x28] sm:$0xff]
    %v613 = vld [vmem:[%s4 + $0x30] sm:$0xff]
    %v614 = vld [vmem:[%s4 + $0x38] sm:$0xff]
    %615 = vxpose.xlu0.b32.start [1/16] %v599, 128
    %616 = vxpose.xlu0.b32.cont [2/16] %v600, 128
    %617 = vxpose.xlu0.b32.cont [3/16] %v601, 128
    %618 = vxpose.xlu0.b32.cont [4/16] %v602, 128
    %619 = vxpose.xlu0.b32.cont [5/16] %v603, 128
    %620 = vxpose.xlu0.b32.cont [6/16] %v604, 128
    %621 = vxpose.xlu0.b32.cont [7/16] %v605, 128
    %622 = vxpose.xlu0.b32.cont [8/16] %v606, 128
    %623 = vxpose.xlu0.b32.cont [9/16] 0.0, 128
    %624 = vxpose.xlu0.b32.cont [10/16] 0.0, 128
    %625 = vxpose.xlu0.b32.cont [11/16] 0.0, 128
    %626 = vxpose.xlu0.b32.cont [12/16] 0.0, 128
    %627 = vxpose.xlu0.b32.cont [13/16] 0.0, 128
    %628 = vxpose.xlu0.b32.cont [14/16] 0.0, 128
    %629 = vxpose.xlu0.b32.cont [15/16] 0.0, 128
    %630 = vxpose.xlu0.b32.end [16/16] 0.0, 128
    %v631 = vpop.trf.xlu0
    %v632 = vpop.trf.xlu0
    %v633 = vpop.trf.xlu0
    %v634 = vpop.trf.xlu0
    %v635 = vpop.trf.xlu0
    %v636 = vpop.trf.xlu0
    %v637 = vpop.trf.xlu0
    %v638 = vpop.trf.xlu0
    %v639 = vpop.trf.xlu0
    %v640 = vpop.trf.xlu0
    %v641 = vpop.trf.xlu0
    %v642 = vpop.trf.xlu0
    %v643 = vpop.trf.xlu0
    %v644 = vpop.trf.xlu0
    %v645 = vpop.trf.xlu0
    %v646 = vpop.trf.xlu0
    %vm647 = vcmask 523264
    %v649 = vsel %vm647, %v631, 0
    %651 = vmatprep.subr.mxu0 0.0
    %652 = vmatpush1.msra.mxu0 %v607
    %653 = vmatprep.subr.mxu0 0.0
    %654 = vmatpush1.msra.mxu0 %v608
    %655 = vmatprep.subr.mxu0 0.0
    %656 = vmatpush1.msra.mxu0 %v609
    %657 = vmatprep.subr.mxu0 0.0
    %658 = vmatpush1.msra.mxu0 %v610
    %659 = vmatprep.subr.mxu0 0.0
    %660 = vmatpush1.msra.mxu0 %v611
    %661 = vmatprep.subr.mxu0 0.0
    %662 = vmatpush1.msra.mxu0 %v612
    %663 = vmatprep.subr.mxu0 0.0
    %664 = vmatpush1.msra.mxu0 %v613
    %665 = vmatprep.subr.mxu0 0.0
    %666 = vmatpush1.msra.mxu0 %v614
    %667 = vmatprep.subr.mxu0 0.0
    %668 = vmatpush1.msra.mxu0 0.0
    %669 = vmatprep.subr.mxu0 0.0
    %670 = vmatpush1.msra.mxu0 0.0
    %671 = vmatprep.subr.mxu0 0.0
    %672 = vmatpush1.msra.mxu0 0.0
    %673 = vmatprep.subr.mxu0 0.0
    %674 = vmatpush1.msra.mxu0 0.0
    %675 = vmatprep.subr.mxu0 0.0
    %676 = vmatpush1.msra.mxu0 0.0
    %677 = vmatprep.subr.mxu0 0.0
    %678 = vmatpush1.msra.mxu0 0.0
    %679 = vmatprep.subr.mxu0 0.0
    %680 = vmatpush1.msra.mxu0 0.0
    %681 = vmatprep.subr.mxu0 0.0
    %682 = vmatpush1.msra.mxu0 0.0
    %683 = vmatprep.subr.mxu0 0.0
    %684 = vmatpush1.msra.mxu0 0.0
    %685 = vmatprep.subr.mxu0 0.0
    %686 = vmatpush1.msra.mxu0 0.0
    %687 = vmatprep.subr.mxu0 0.0
    %688 = vmatpush1.msra.mxu0 0.0
    %689 = vmatprep.subr.mxu0 0.0
    %690 = vmatpush1.msra.mxu0 0.0
    %691 = vmatprep.subr.mxu0 0.0
    %692 = vmatpush1.msra.mxu0 0.0
    %693 = vmatprep.subr.mxu0 0.0
    %694 = vmatpush1.msra.mxu0 0.0
    %695 = vmatprep.subr.mxu0 0.0
    %696 = vmatpush1.msra.mxu0 0.0
    %697 = vmatprep.subr.mxu0 0.0
    %698 = vmatpush1.msra.mxu0 0.0
    %699 = vmatprep.subr.mxu0 0.0
    %700 = vmatpush1.msra.mxu0 0.0
    %701 = vmatprep.subr.mxu0 0.0
    %702 = vmatpush1.msra.mxu0 0.0
    %703 = vmatprep.subr.mxu0 0.0
    %704 = vmatpush1.msra.mxu0 0.0
    %705 = vmatprep.subr.mxu0 0.0
    %706 = vmatpush1.msra.mxu0 0.0
    %707 = vmatprep.subr.mxu0 0.0
    %708 = vmatpush1.msra.mxu0 0.0
    %709 = vmatprep.subr.mxu0 0.0
    %710 = vmatpush1.msra.mxu0 0.0
    %711 = vmatprep.subr.mxu0 0.0
    %712 = vmatpush1.msra.mxu0 0.0
    %713 = vmatprep.subr.mxu0 0.0
    %714 = vmatpush1.msra.mxu0 0.0
    %715 = vmatprep.mubr.f32.mxu0 0.0
    %716 = vmatmul.mubr.f32.gmra.mrb[0].mxu0 %v649
    %v717 = vpop.f32.mrb[0].mxu0
    %v718 = vadd.f32 0.0, %v717
    %v719 = vpop.f32.mrb[0].mxu0
    %720 = vdwg.mxu0
    %v721 = vld [vmem:[#allocation6] sm:$0x1]
    %v722 = vlaneseq
    %v723 = vshrl.u32 %v722, 7
    %v724 = vsub.s32 0, %v723
    %v725 = vrot.slane %v721, %v724
    %v726 = vmul.f32 %v718, %v725
    %v727 = vld [vmem:[#allocation6 + $0x1] sm:$0x1]
    %v728 = vlaneseq
    %v729 = vshrl.u32 %v728, 7
    %v730 = vsub.s32 0, %v729
    %v731 = vrot.slane %v727, %v730
    %v732 = vadd.f32 %v726, %v731
    %v733 = vmax.f32 %v732, 0.0
    %v734 = vpack.c.bf16 %v733, %v733
    %v735 = vld [vmem:[%s5] sm:$0xff]
    %v736 = vld [vmem:[%s5 + $0x8] sm:$0xff]
    %v737 = vld [vmem:[%s5 + $0x10] sm:$0xff]
    %v738 = vld [vmem:[%s5 + $0x18] sm:$0xff]
    %v739 = vld [vmem:[%s5 + $0x20] sm:$0xff]
    %v740 = vld [vmem:[%s5 + $0x28] sm:$0xff]
    %v741 = vld [vmem:[%s5 + $0x30] sm:$0xff]
    %v742 = vld [vmem:[%s5 + $0x38] sm:$0xff]
    %v743 = vld [vmem:[%s5 + $0x40] sm:$0xff]
    %v744 = vld [vmem:[%s5 + $0x48] sm:$0xff]
    %v745 = vld [vmem:[%s5 + $0x50] sm:$0xff]
    %v746 = vld [vmem:[%s5 + $0x58] sm:$0xff]
    %v747 = vld [vmem:[%s5 + $0x60] sm:$0xff]
    %v748 = vld [vmem:[%s5 + $0x68] sm:$0xff]
    %v749 = vld [vmem:[%s5 + $0x70] sm:$0xff]
    %v750 = vld [vmem:[%s5 + $0x78] sm:$0xff]
    %v751 = vld [vmem:[%s5 + $0x80] sm:$0xff]
    %v752 = vld [vmem:[%s5 + $0x88] sm:$0xff]
    %v753 = vld [vmem:[%s5 + $0x90] sm:$0xff]
    %v754 = vld [vmem:[%s5 + $0x98] sm:$0xff]
    %v755 = vld [vmem:[%s5 + $0xa0] sm:$0xff]
    %v756 = vld [vmem:[%s5 + $0xa8] sm:$0xff]
    %v757 = vld [vmem:[%s5 + $0xb0] sm:$0xff]
    %v758 = vld [vmem:[%s5 + $0xb8] sm:$0xff]
    %v759 = vld [vmem:[%s5 + $0xc0] sm:$0xff]
    %v760 = vld [vmem:[%s5 + $0xc8] sm:$0xff]
    %v761 = vld [vmem:[%s5 + $0xd0] sm:$0xff]
    %v762 = vld [vmem:[%s5 + $0xd8] sm:$0xff]
    %v763 = vld [vmem:[%s5 + $0xe0] sm:$0xff]
    %v764 = vld [vmem:[%s5 + $0xe8] sm:$0xff]
    %v765 = vld [vmem:[%s5 + $0xf0] sm:$0xff]
    %v766 = vld [vmem:[%s5 + $0xf8] sm:$0xff]
    %v799 = vunpack.c.l.b16 %v735
    %v800 = vunpack.c.h.b16 %v735
    %v801 = vunpack.c.l.b16 %v736
    %v802 = vunpack.c.h.b16 %v736
    %v803 = vunpack.c.l.b16 %v737
    %v804 = vunpack.c.h.b16 %v737
    %v805 = vunpack.c.l.b16 %v738
    %v806 = vunpack.c.h.b16 %v738
    %v807 = vunpack.c.l.b16 %v739
    %v808 = vunpack.c.h.b16 %v739
    %v809 = vunpack.c.l.b16 %v740
    %v810 = vunpack.c.h.b16 %v740
    %v811 = vunpack.c.l.b16 %v741
    %v812 = vunpack.c.h.b16 %v741
    %v813 = vunpack.c.l.b16 %v742
    %v814 = vunpack.c.h.b16 %v742
    %v815 = vunpack.c.l.b16 %v743
    %v816 = vunpack.c.h.b16 %v743
    %v817 = vunpack.c.l.b16 %v744
    %v818 = vunpack.c.h.b16 %v744
    %v819 = vunpack.c.l.b16 %v745
    %v820 = vunpack.c.h.b16 %v745
    %v821 = vunpack.c.l.b16 %v746
    %v822 = vunpack.c.h.b16 %v746
    %v823 = vunpack.c.l.b16 %v747
    %v824 = vunpack.c.h.b16 %v747
    %v825 = vunpack.c.l.b16 %v748
    %v826 = vunpack.c.h.b16 %v748
    %v827 = vunpack.c.l.b16 %v749
    %v828 = vunpack.c.h.b16 %v749
    %v829 = vunpack.c.l.b16 %v750
    %v830 = vunpack.c.h.b16 %v750
    %v831 = vunpack.c.l.b16 %v751
    %v832 = vunpack.c.h.b16 %v751
    %v833 = vunpack.c.l.b16 %v752
    %v834 = vunpack.c.h.b16 %v752
    %v835 = vunpack.c.l.b16 %v753
    %v836 = vunpack.c.h.b16 %v753
    %v837 = vunpack.c.l.b16 %v754
    %v838 = vunpack.c.h.b16 %v754
    %v839 = vunpack.c.l.b16 %v755
    %v840 = vunpack.c.h.b16 %v755
    %v841 = vunpack.c.l.b16 %v756
    %v842 = vunpack.c.h.b16 %v756
    %v843 = vunpack.c.l.b16 %v757
    %v844 = vunpack.c.h.b16 %v757
    %v845 = vunpack.c.l.b16 %v758
    %v846 = vunpack.c.h.b16 %v758
    %v847 = vunpack.c.l.b16 %v759
    %v848 = vunpack.c.h.b16 %v759
    %v849 = vunpack.c.l.b16 %v760
    %v850 = vunpack.c.h.b16 %v760
    %v851 = vunpack.c.l.b16 %v761
    %v852 = vunpack.c.h.b16 %v761
    %v853 = vunpack.c.l.b16 %v762
    %v854 = vunpack.c.h.b16 %v762
    %v855 = vunpack.c.l.b16 %v763
    %v856 = vunpack.c.h.b16 %v763
    %v857 = vunpack.c.l.b16 %v764
    %v858 = vunpack.c.h.b16 %v764
    %v859 = vunpack.c.l.b16 %v765
    %v860 = vunpack.c.h.b16 %v765
    %v861 = vunpack.c.l.b16 %v766
    %v862 = vunpack.c.h.b16 %v766
    %v863 = vpack.c.b16 %v803, %v799
    %v864 = vpack.c.b16 %v804, %v800
    %v865 = vpack.c.b16 %v805, %v801
    %v866 = vpack.c.b16 %v806, %v802
    %v867 = vpack.c.b16 %v811, %v807
    %v868 = vpack.c.b16 %v812, %v808
    %v869 = vpack.c.b16 %v813, %v809
    %v870 = vpack.c.b16 %v814, %v810
    %v871 = vpack.c.b16 %v819, %v815
    %v872 = vpack.c.b16 %v820, %v816
    %v873 = vpack.c.b16 %v821, %v817
    %v874 = vpack.c.b16 %v822, %v818
    %v875 = vpack.c.b16 %v827, %v823
    %v876 = vpack.c.b16 %v828, %v824
    %v877 = vpack.c.b16 %v829, %v825
    %v878 = vpack.c.b16 %v830, %v826
    %v879 = vpack.c.b16 %v835, %v831
    %v880 = vpack.c.b16 %v836, %v832
    %v881 = vpack.c.b16 %v837, %v833
    %v882 = vpack.c.b16 %v838, %v834
    %v883 = vpack.c.b16 %v843, %v839
    %v884 = vpack.c.b16 %v844, %v840
    %v885 = vpack.c.b16 %v845, %v841
    %v886 = vpack.c.b16 %v846, %v842
    %v887 = vpack.c.b16 %v851, %v847
    %v888 = vpack.c.b16 %v852, %v848
    %v889 = vpack.c.b16 %v853, %v849
    %v890 = vpack.c.b16 %v854, %v850
    %v891 = vpack.c.b16 %v859, %v855
    %v892 = vpack.c.b16 %v860, %v856
    %v893 = vpack.c.b16 %v861, %v857
    %v894 = vpack.c.b16 %v862, %v858
    %927 = vmatprep.subr.bf16.mxu0 %v864
    %928 = vmatpush1.bf16.msra.mxu0 %v863
    %929 = vmatprep.subr.bf16.mxu0 %v868
    %930 = vmatpush1.bf16.msra.mxu0 %v867
    %931 = vmatprep.subr.bf16.mxu0 %v872
    %932 = vmatpush1.bf16.msra.mxu0 %v871
    %933 = vmatprep.subr.bf16.mxu0 %v876
    %934 = vmatpush1.bf16.msra.mxu0 %v875
    %935 = vmatprep.subr.bf16.mxu0 %v880
    %936 = vmatpush1.bf16.msra.mxu0 %v879
    %937 = vmatprep.subr.bf16.mxu0 %v884
    %938 = vmatpush1.bf16.msra.mxu0 %v883
    %939 = vmatprep.subr.bf16.mxu0 %v888
    %940 = vmatpush1.bf16.msra.mxu0 %v887
    %941 = vmatprep.subr.bf16.mxu0 %v892
    %942 = vmatpush1.bf16.msra.mxu0 %v891
    %943 = vmatprep.subr.bf16.mxu0 0
    %944 = vmatpush1.bf16.msra.mxu0 0
    %945 = vmatprep.subr.bf16.mxu0 0
    %946 = vmatpush1.bf16.msra.mxu0 0
    %947 = vmatprep.subr.bf16.mxu0 0
    %948 = vmatpush1.bf16.msra.mxu0 0
    %949 = vmatprep.subr.bf16.mxu0 0
    %950 = vmatpush1.bf16.msra.mxu0 0
    %951 = vmatprep.subr.bf16.mxu0 0
    %952 = vmatpush1.bf16.msra.mxu0 0
    %953 = vmatprep.subr.bf16.mxu0 0
    %954 = vmatpush1.bf16.msra.mxu0 0
    %955 = vmatprep.subr.bf16.mxu0 0
    %956 = vmatpush1.bf16.msra.mxu0 0
    %957 = vmatprep.subr.bf16.mxu0 0
    %958 = vmatpush1.bf16.msra.mxu0 0
    %959 = vmatprep.mubr.bf16.mxu0 0
    %960 = vmatmul.mubr.bf16.gmra.mrb[0].mxu0 %v734
    %v961 = vpop.f32.mrb[0].mxu0
    %v962 = vadd.f32 0.0, %v961
    %v963 = vpop.f32.mrb[0].mxu0
    %v964 = vadd.f32 0.0, %v963
    %v965 = vpop.f32.mrb[0].mxu0
    %v966 = vpop.f32.mrb[0].mxu0
    %967 = vdwg.mxu0
    %968 = vmatprep.subr.bf16.mxu0 %v866
    %969 = vmatpush1.bf16.msra.mxu0 %v865
    %970 = vmatprep.subr.bf16.mxu0 %v870
    %971 = vmatpush1.bf16.msra.mxu0 %v869
    %972 = vmatprep.subr.bf16.mxu0 %v874
    %973 = vmatpush1.bf16.msra.mxu0 %v873
    %974 = vmatprep.subr.bf16.mxu0 %v878
    %975 = vmatpush1.bf16.msra.mxu0 %v877
    %976 = vmatprep.subr.bf16.mxu0 %v882
    %977 = vmatpush1.bf16.msra.mxu0 %v881
    %978 = vmatprep.subr.bf16.mxu0 %v886
    %979 = vmatpush1.bf16.msra.mxu0 %v885
    %980 = vmatprep.subr.bf16.mxu0 %v890
    %981 = vmatpush1.bf16.msra.mxu0 %v889
    %982 = vmatprep.subr.bf16.mxu0 %v894
    %983 = vmatpush1.bf16.msra.mxu0 %v893
    %984 = vmatprep.subr.bf16.mxu0 0
    %985 = vmatpush1.bf16.msra.mxu0 0
    %986 = vmatprep.subr.bf16.mxu0 0
    %987 = vmatpush1.bf16.msra.mxu0 0
    %988 = vmatprep.subr.bf16.mxu0 0
    %989 = vmatpush1.bf16.msra.mxu0 0
    %990 = vmatprep.subr.bf16.mxu0 0
    %991 = vmatpush1.bf16.msra.mxu0 0
    %992 = vmatprep.subr.bf16.mxu0 0
    %993 = vmatpush1.bf16.msra.mxu0 0
    %994 = vmatprep.subr.bf16.mxu0 0
    %995 = vmatpush1.bf16.msra.mxu0 0
    %996 = vmatprep.subr.bf16.mxu0 0
    %997 = vmatpush1.bf16.msra.mxu0 0
    %998 = vmatprep.subr.bf16.mxu0 0
    %999 = vmatpush1.bf16.msra.mxu0 0
    %1000 = vmatprep.mubr.bf16.mxu0 0
    %1001 = vmatmul.mubr.bf16.gmra.mrb[0].mxu0 %v734
    %v1002 = vpop.f32.mrb[0].mxu0
    %v1003 = vadd.f32 0.0, %v1002
    %v1004 = vpop.f32.mrb[0].mxu0
    %v1005 = vadd.f32 0.0, %v1004
    %v1006 = vpop.f32.mrb[0].mxu0
    %v1007 = vpop.f32.mrb[0].mxu0
    %1008 = vdwg.mxu0
    %s1009 = scalar_lea.vmem [#allocation6], 2
    %v1010 = vld [vmem:[%s1009] ss:$2 sm:$0xf]
    %v1012 = vlaneseq
    %v1013 = vshrl.u32 %v1012, 7
    %v1014 = vsub.s32 0, %v1013
    %v1015 = vrot.slane %v1010, %v1014
    %v1016 = vlaneseq
    %v1017 = vshrl.u32 %v1016, 7
    %v1018 = vsub.s32 1, %v1017
    %v1019 = vrot.slane %v1010, %v1018
    %v1020 = vlaneseq
    %v1021 = vshrl.u32 %v1020, 7
    %v1022 = vsub.s32 2, %v1021
    %v1023 = vrot.slane %v1010, %v1022
    %v1024 = vlaneseq
    %v1025 = vshrl.u32 %v1024, 7
    %v1026 = vsub.s32 3, %v1025
    %v1027 = vrot.slane %v1010, %v1026
    %v1032 = vmul.f32 %v962, %v1015
    %v1033 = vmul.f32 %v964, %v1019
    %v1034 = vmul.f32 %v1003, %v1023
    %v1035 = vmul.f32 %v1005, %v1027
    %s1036 = scalar_lea.vmem [#allocation6], 3
    %v1037 = vld [vmem:[%s1036] ss:$2 sm:$0xf]
    %v1039 = vlaneseq
    %v1040 = vshrl.u32 %v1039, 7
    %v1041 = vsub.s32 0, %v1040
    %v1042 = vrot.slane %v1037, %v1041
    %v1043 = vlaneseq
    %v1044 = vshrl.u32 %v1043, 7
    %v1045 = vsub.s32 1, %v1044
    %v1046 = vrot.slane %v1037, %v1045
    %v1047 = vlaneseq
    %v1048 = vshrl.u32 %v1047, 7
    %v1049 = vsub.s32 2, %v1048
    %v1050 = vrot.slane %v1037, %v1049
    %v1051 = vlaneseq
    %v1052 = vshrl.u32 %v1051, 7
    %v1053 = vsub.s32 3, %v1052
    %v1054 = vrot.slane %v1037, %v1053
    %v1059 = vadd.f32 %v1032, %v1042
    %v1060 = vadd.f32 %v1033, %v1046
    %v1061 = vadd.f32 %v1034, %v1050
    %v1062 = vadd.f32 %v1035, %v1054
    %v1063 = vmax.f32 %v1059, 0.0
    %v1064 = vmax.f32 %v1060, 0.0
    %v1065 = vmax.f32 %v1061, 0.0
    %v1066 = vmax.f32 %v1062, 0.0
    %v1067 = vpack.c.bf16 %v1063, %v1063
    %v1068 = vpack.c.bf16 %v1064, %v1064
    %v1069 = vpack.c.bf16 %v1065, %v1065
    %v1070 = vpack.c.bf16 %v1066, %v1066
    %v1071 = vld [vmem:[#allocation2] sm:$0xff]
    %v1072 = vld [vmem:[#allocation2 + $0x8] sm:$0xff]
    %v1073 = vld [vmem:[#allocation2 + $0x10] sm:$0xff]
    %v1074 = vld [vmem:[#allocation2 + $0x18] sm:$0xff]
    %v1075 = vld [vmem:[#allocation2 + $0x20] sm:$0xff]
    %v1076 = vld [vmem:[#allocation2 + $0x28] sm:$0xff]
    %v1077 = vld [vmem:[#allocation2 + $0x30] sm:$0xff]
    %v1078 = vld [vmem:[#allocation2 + $0x38] sm:$0xff]
    %v1079 = vld [vmem:[#allocation2 + $0x40] sm:$0xff]
    %v1080 = vld [vmem:[#allocation2 + $0x48] sm:$0xff]
    %v1081 = vld [vmem:[#allocation2 + $0x50] sm:$0xff]
    %v1082 = vld [vmem:[#allocation2 + $0x58] sm:$0xff]
    %v1083 = vld [vmem:[#allocation2 + $0x60] sm:$0xff]
    %v1084 = vld [vmem:[#allocation2 + $0x68] sm:$0xff]
    %v1085 = vld [vmem:[#allocation2 + $0x70] sm:$0xff]
    %v1086 = vld [vmem:[#allocation2 + $0x78] sm:$0xff]
    %v1087 = vld [vmem:[#allocation2 + $0x80] sm:$0xff]
    %v1088 = vld [vmem:[#allocation2 + $0x88] sm:$0xff]
    %v1089 = vld [vmem:[#allocation2 + $0x90] sm:$0xff]
    %v1090 = vld [vmem:[#allocation2 + $0x98] sm:$0xff]
    %v1091 = vld [vmem:[#allocation2 + $0xa0] sm:$0xff]
    %v1092 = vld [vmem:[#allocation2 + $0xa8] sm:$0xff]
    %v1093 = vld [vmem:[#allocation2 + $0xb0] sm:$0xff]
    %v1094 = vld [vmem:[#allocation2 + $0xb8] sm:$0xff]
    %v1095 = vld [vmem:[#allocation2 + $0xc0] sm:$0xff]
    %v1096 = vld [vmem:[#allocation2 + $0xc8] sm:$0xff]
    %v1097 = vld [vmem:[#allocation2 + $0xd0] sm:$0xff]
    %v1098 = vld [vmem:[#allocation2 + $0xd8] sm:$0xff]
    %v1099 = vld [vmem:[#allocation2 + $0xe0] sm:$0xff]
    %v1100 = vld [vmem:[#allocation2 + $0xe8] sm:$0xff]
    %v1101 = vld [vmem:[#allocation2 + $0xf0] sm:$0xff]
    %v1102 = vld [vmem:[#allocation2 + $0xf8] sm:$0xff]
    %v1103 = vld [vmem:[#allocation2 + $0x100] sm:$0xff]
    %v1104 = vld [vmem:[#allocation2 + $0x108] sm:$0xff]
    %v1105 = vld [vmem:[#allocation2 + $0x110] sm:$0xff]
    %v1106 = vld [vmem:[#allocation2 + $0x118] sm:$0xff]
    %v1107 = vld [vmem:[#allocation2 + $0x120] sm:$0xff]
    %v1108 = vld [vmem:[#allocation2 + $0x128] sm:$0xff]
    %v1109 = vld [vmem:[#allocation2 + $0x130] sm:$0xff]
    %v1110 = vld [vmem:[#allocation2 + $0x138] sm:$0xff]
    %v1111 = vld [vmem:[#allocation2 + $0x140] sm:$0xff]
    %v1112 = vld [vmem:[#allocation2 + $0x148] sm:$0xff]
    %v1113 = vld [vmem:[#allocation2 + $0x150] sm:$0xff]
    %v1114 = vld [vmem:[#allocation2 + $0x158] sm:$0xff]
    %v1115 = vld [vmem:[#allocation2 + $0x160] sm:$0xff]
    %v1116 = vld [vmem:[#allocation2 + $0x168] sm:$0xff]
    %v1117 = vld [vmem:[#allocation2 + $0x170] sm:$0xff]
    %v1118 = vld [vmem:[#allocation2 + $0x178] sm:$0xff]
    %v1119 = vld [vmem:[#allocation2 + $0x180] sm:$0xff]
    %v1120 = vld [vmem:[#allocation2 + $0x188] sm:$0xff]
    %v1121 = vld [vmem:[#allocation2 + $0x190] sm:$0xff]
    %v1122 = vld [vmem:[#allocation2 + $0x198] sm:$0xff]
    %v1123 = vld [vmem:[#allocation2 + $0x1a0] sm:$0xff]
    %v1124 = vld [vmem:[#allocation2 + $0x1a8] sm:$0xff]
    %v1125 = vld [vmem:[#allocation2 + $0x1b0] sm:$0xff]
    %v1126 = vld [vmem:[#allocation2 + $0x1b8] sm:$0xff]
    %v1127 = vld [vmem:[#allocation2 + $0x1c0] sm:$0xff]
    %v1128 = vld [vmem:[#allocation2 + $0x1c8] sm:$0xff]
    %v1129 = vld [vmem:[#allocation2 + $0x1d0] sm:$0xff]
    %v1130 = vld [vmem:[#allocation2 + $0x1d8] sm:$0xff]
    %v1131 = vld [vmem:[#allocation2 + $0x1e0] sm:$0xff]
    %v1132 = vld [vmem:[#allocation2 + $0x1e8] sm:$0xff]
    %v1133 = vld [vmem:[#allocation2 + $0x1f0] sm:$0xff]
    %v1134 = vld [vmem:[#allocation2 + $0x1f8] sm:$0xff]
    %v1199 = vunpack.c.l.b16 %v1071
    %v1200 = vunpack.c.h.b16 %v1071
    %v1201 = vunpack.c.l.b16 %v1072
    %v1202 = vunpack.c.h.b16 %v1072
    %v1203 = vunpack.c.l.b16 %v1073
    %v1204 = vunpack.c.h.b16 %v1073
    %v1205 = vunpack.c.l.b16 %v1074
    %v1206 = vunpack.c.h.b16 %v1074
    %v1207 = vunpack.c.l.b16 %v1075
    %v1208 = vunpack.c.h.b16 %v1075
    %v1209 = vunpack.c.l.b16 %v1076
    %v1210 = vunpack.c.h.b16 %v1076
    %v1211 = vunpack.c.l.b16 %v1077
    %v1212 = vunpack.c.h.b16 %v1077
    %v1213 = vunpack.c.l.b16 %v1078
    %v1214 = vunpack.c.h.b16 %v1078
    %v1215 = vunpack.c.l.b16 %v1079
    %v1216 = vunpack.c.h.b16 %v1079
    %v1217 = vunpack.c.l.b16 %v1080
    %v1218 = vunpack.c.h.b16 %v1080
    %v1219 = vunpack.c.l.b16 %v1081
    %v1220 = vunpack.c.h.b16 %v1081
    %v1221 = vunpack.c.l.b16 %v1082
    %v1222 = vunpack.c.h.b16 %v1082
    %v1223 = vunpack.c.l.b16 %v1083
    %v1224 = vunpack.c.h.b16 %v1083
    %v1225 = vunpack.c.l.b16 %v1084
    %v1226 = vunpack.c.h.b16 %v1084
    %v1227 = vunpack.c.l.b16 %v1085
    %v1228 = vunpack.c.h.b16 %v1085
    %v1229 = vunpack.c.l.b16 %v1086
    %v1230 = vunpack.c.h.b16 %v1086
    %v1231 = vunpack.c.l.b16 %v1087
    %v1232 = vunpack.c.h.b16 %v1087
    %v1233 = vunpack.c.l.b16 %v1088
    %v1234 = vunpack.c.h.b16 %v1088
    %v1235 = vunpack.c.l.b16 %v1089
    %v1236 = vunpack.c.h.b16 %v1089
    %v1237 = vunpack.c.l.b16 %v1090
    %v1238 = vunpack.c.h.b16 %v1090
    %v1239 = vunpack.c.l.b16 %v1091
    %v1240 = vunpack.c.h.b16 %v1091
    %v1241 = vunpack.c.l.b16 %v1092
    %v1242 = vunpack.c.h.b16 %v1092
    %v1243 = vunpack.c.l.b16 %v1093
    %v1244 = vunpack.c.h.b16 %v1093
    %v1245 = vunpack.c.l.b16 %v1094
    %v1246 = vunpack.c.h.b16 %v1094
    %v1247 = vunpack.c.l.b16 %v1095
    %v1248 = vunpack.c.h.b16 %v1095
    %v1249 = vunpack.c.l.b16 %v1096
    %v1250 = vunpack.c.h.b16 %v1096
    %v1251 = vunpack.c.l.b16 %v1097
    %v1252 = vunpack.c.h.b16 %v1097
    %v1253 = vunpack.c.l.b16 %v1098
    %v1254 = vunpack.c.h.b16 %v1098
    %v1255 = vunpack.c.l.b16 %v1099
    %v1256 = vunpack.c.h.b16 %v1099
    %v1257 = vunpack.c.l.b16 %v1100
    %v1258 = vunpack.c.h.b16 %v1100
    %v1259 = vunpack.c.l.b16 %v1101
    %v1260 = vunpack.c.h.b16 %v1101
    %v1261 = vunpack.c.l.b16 %v1102
    %v1262 = vunpack.c.h.b16 %v1102
    %v1263 = vunpack.c.l.b16 %v1103
    %v1264 = vunpack.c.h.b16 %v1103
    %v1265 = vunpack.c.l.b16 %v1104
    %v1266 = vunpack.c.h.b16 %v1104
    %v1267 = vunpack.c.l.b16 %v1105
    %v1268 = vunpack.c.h.b16 %v1105
    %v1269 = vunpack.c.l.b16 %v1106
    %v1270 = vunpack.c.h.b16 %v1106
    %v1271 = vunpack.c.l.b16 %v1107
    %v1272 = vunpack.c.h.b16 %v1107
    %v1273 = vunpack.c.l.b16 %v1108
    %v1274 = vunpack.c.h.b16 %v1108
    %v1275 = vunpack.c.l.b16 %v1109
    %v1276 = vunpack.c.h.b16 %v1109
    %v1277 = vunpack.c.l.b16 %v1110
    %v1278 = vunpack.c.h.b16 %v1110
    %v1279 = vunpack.c.l.b16 %v1111
    %v1280 = vunpack.c.h.b16 %v1111
    %v1281 = vunpack.c.l.b16 %v1112
    %v1282 = vunpack.c.h.b16 %v1112
    %v1283 = vunpack.c.l.b16 %v1113
    %v1284 = vunpack.c.h.b16 %v1113
    %v1285 = vunpack.c.l.b16 %v1114
    %v1286 = vunpack.c.h.b16 %v1114
    %v1287 = vunpack.c.l.b16 %v1115
    %v1288 = vunpack.c.h.b16 %v1115
    %v1289 = vunpack.c.l.b16 %v1116
    %v1290 = vunpack.c.h.b16 %v1116
    %v1291 = vunpack.c.l.b16 %v1117
    %v1292 = vunpack.c.h.b16 %v1117
    %v1293 = vunpack.c.l.b16 %v1118
    %v1294 = vunpack.c.h.b16 %v1118
    %v1295 = vunpack.c.l.b16 %v1119
    %v1296 = vunpack.c.h.b16 %v1119
    %v1297 = vunpack.c.l.b16 %v1120
    %v1298 = vunpack.c.h.b16 %v1120
    %v1299 = vunpack.c.l.b16 %v1121
    %v1300 = vunpack.c.h.b16 %v1121
    %v1301 = vunpack.c.l.b16 %v1122
    %v1302 = vunpack.c.h.b16 %v1122
    %v1303 = vunpack.c.l.b16 %v1123
    %v1304 = vunpack.c.h.b16 %v1123
    %v1305 = vunpack.c.l.b16 %v1124
    %v1306 = vunpack.c.h.b16 %v1124
    %v1307 = vunpack.c.l.b16 %v1125
    %v1308 = vunpack.c.h.b16 %v1125
    %v1309 = vunpack.c.l.b16 %v1126
    %v1310 = vunpack.c.h.b16 %v1126
    %v1311 = vunpack.c.l.b16 %v1127
    %v1312 = vunpack.c.h.b16 %v1127
    %v1313 = vunpack.c.l.b16 %v1128
    %v1314 = vunpack.c.h.b16 %v1128
    %v1315 = vunpack.c.l.b16 %v1129
    %v1316 = vunpack.c.h.b16 %v1129
    %v1317 = vunpack.c.l.b16 %v1130
    %v1318 = vunpack.c.h.b16 %v1130
    %v1319 = vunpack.c.l.b16 %v1131
    %v1320 = vunpack.c.h.b16 %v1131
    %v1321 = vunpack.c.l.b16 %v1132
    %v1322 = vunpack.c.h.b16 %v1132
    %v1323 = vunpack.c.l.b16 %v1133
    %v1324 = vunpack.c.h.b16 %v1133
    %v1325 = vunpack.c.l.b16 %v1134
    %v1326 = vunpack.c.h.b16 %v1134
    %v1327 = vpack.c.b16 %v1201, %v1199
    %v1328 = vpack.c.b16 %v1202, %v1200
    %v1329 = vpack.c.b16 %v1205, %v1203
    %v1330 = vpack.c.b16 %v1206, %v1204
    %v1331 = vpack.c.b16 %v1209, %v1207
    %v1332 = vpack.c.b16 %v1210, %v1208
    %v1333 = vpack.c.b16 %v1213, %v1211
    %v1334 = vpack.c.b16 %v1214, %v1212
    %v1335 = vpack.c.b16 %v1217, %v1215
    %v1336 = vpack.c.b16 %v1218, %v1216
    %v1337 = vpack.c.b16 %v1221, %v1219
    %v1338 = vpack.c.b16 %v1222, %v1220
    %v1339 = vpack.c.b16 %v1225, %v1223
    %v1340 = vpack.c.b16 %v1226, %v1224
    %v1341 = vpack.c.b16 %v1229, %v1227
    %v1342 = vpack.c.b16 %v1230, %v1228
    %v1343 = vpack.c.b16 %v1233, %v1231
    %v1344 = vpack.c.b16 %v1234, %v1232
    %v1345 = vpack.c.b16 %v1237, %v1235
    %v1346 = vpack.c.b16 %v1238, %v1236
    %v1347 = vpack.c.b16 %v1241, %v1239
    %v1348 = vpack.c.b16 %v1242, %v1240
    %v1349 = vpack.c.b16 %v1245, %v1243
    %v1350 = vpack.c.b16 %v1246, %v1244
    %v1351 = vpack.c.b16 %v1249, %v1247
    %v1352 = vpack.c.b16 %v1250, %v1248
    %v1353 = vpack.c.b16 %v1253, %v1251
    %v1354 = vpack.c.b16 %v1254, %v1252
    %v1355 = vpack.c.b16 %v1257, %v1255
    %v1356 = vpack.c.b16 %v1258, %v1256
    %v1357 = vpack.c.b16 %v1261, %v1259
    %v1358 = vpack.c.b16 %v1262, %v1260
    %v1359 = vpack.c.b16 %v1265, %v1263
    %v1360 = vpack.c.b16 %v1266, %v1264
    %v1361 = vpack.c.b16 %v1269, %v1267
    %v1362 = vpack.c.b16 %v1270, %v1268
    %v1363 = vpack.c.b16 %v1273, %v1271
    %v1364 = vpack.c.b16 %v1274, %v1272
    %v1365 = vpack.c.b16 %v1277, %v1275
    %v1366 = vpack.c.b16 %v1278, %v1276
    %v1367 = vpack.c.b16 %v1281, %v1279
    %v1368 = vpack.c.b16 %v1282, %v1280
    %v1369 = vpack.c.b16 %v1285, %v1283
    %v1370 = vpack.c.b16 %v1286, %v1284
    %v1371 = vpack.c.b16 %v1289, %v1287
    %v1372 = vpack.c.b16 %v1290, %v1288
    %v1373 = vpack.c.b16 %v1293, %v1291
    %v1374 = vpack.c.b16 %v1294, %v1292
    %v1375 = vpack.c.b16 %v1297, %v1295
    %v1376 = vpack.c.b16 %v1298, %v1296
    %v1377 = vpack.c.b16 %v1301, %v1299
    %v1378 = vpack.c.b16 %v1302, %v1300
    %v1379 = vpack.c.b16 %v1305, %v1303
    %v1380 = vpack.c.b16 %v1306, %v1304
    %v1381 = vpack.c.b16 %v1309, %v1307
    %v1382 = vpack.c.b16 %v1310, %v1308
    %v1383 = vpack.c.b16 %v1313, %v1311
    %v1384 = vpack.c.b16 %v1314, %v1312
    %v1385 = vpack.c.b16 %v1317, %v1315
    %v1386 = vpack.c.b16 %v1318, %v1316
    %v1387 = vpack.c.b16 %v1321, %v1319
    %v1388 = vpack.c.b16 %v1322, %v1320
    %v1389 = vpack.c.b16 %v1325, %v1323
    %v1390 = vpack.c.b16 %v1326, %v1324
    %1455 = vmatprep.subr.bf16.mxu0 %v1328
    %1456 = vmatpush1.bf16.msra.mxu0 %v1327
    %1457 = vmatprep.subr.bf16.mxu0 %v1330
    %1458 = vmatpush1.bf16.msra.mxu0 %v1329
    %1459 = vmatprep.subr.bf16.mxu0 %v1332
    %1460 = vmatpush1.bf16.msra.mxu0 %v1331
    %1461 = vmatprep.subr.bf16.mxu0 %v1334
    %1462 = vmatpush1.bf16.msra.mxu0 %v1333
    %1463 = vmatprep.subr.bf16.mxu0 %v1336
    %1464 = vmatpush1.bf16.msra.mxu0 %v1335
    %1465 = vmatprep.subr.bf16.mxu0 %v1338
    %1466 = vmatpush1.bf16.msra.mxu0 %v1337
    %1467 = vmatprep.subr.bf16.mxu0 %v1340
    %1468 = vmatpush1.bf16.msra.mxu0 %v1339
    %1469 = vmatprep.subr.bf16.mxu0 %v1342
    %1470 = vmatpush1.bf16.msra.mxu0 %v1341
    %1471 = vmatprep.subr.bf16.mxu0 %v1344
    %1472 = vmatpush1.bf16.msra.mxu0 %v1343
    %1473 = vmatprep.subr.bf16.mxu0 %v1346
    %1474 = vmatpush1.bf16.msra.mxu0 %v1345
    %1475 = vmatprep.subr.bf16.mxu0 %v1348
    %1476 = vmatpush1.bf16.msra.mxu0 %v1347
    %1477 = vmatprep.subr.bf16.mxu0 %v1350
    %1478 = vmatpush1.bf16.msra.mxu0 %v1349
    %1479 = vmatprep.subr.bf16.mxu0 %v1352
    %1480 = vmatpush1.bf16.msra.mxu0 %v1351
    %1481 = vmatprep.subr.bf16.mxu0 %v1354
    %1482 = vmatpush1.bf16.msra.mxu0 %v1353
    %1483 = vmatprep.subr.bf16.mxu0 %v1356
    %1484 = vmatpush1.bf16.msra.mxu0 %v1355
    %1485 = vmatprep.subr.bf16.mxu0 %v1358
    %1486 = vmatpush1.bf16.msra.mxu0 %v1357
    %1487 = vmatprep.mubr.bf16.mxu0 %v1068
    %1488 = vmatmul.mubr.bf16.gmra.mrb[0].mxu0 %v1067
    %v1489 = vpop.f32.mrb[0].mxu0
    %v1490 = vadd.f32 0.0, %v1489
    %v1491 = vpop.f32.mrb[0].mxu0
    %v1492 = vadd.f32 0.0, %v1491
    %v1493 = vpop.f32.mrb[0].mxu0
    %v1494 = vpop.f32.mrb[0].mxu0
    %1495 = vdwg.mxu0
    %1496 = vmatprep.subr.bf16.mxu0 %v1360
    %1497 = vmatpush1.bf16.msra.mxu0 %v1359
    %1498 = vmatprep.subr.bf16.mxu0 %v1362
    %1499 = vmatpush1.bf16.msra.mxu0 %v1361
    %1500 = vmatprep.subr.bf16.mxu0 %v1364
    %1501 = vmatpush1.bf16.msra.mxu0 %v1363
    %1502 = vmatprep.subr.bf16.mxu0 %v1366
    %1503 = vmatpush1.bf16.msra.mxu0 %v1365
    %1504 = vmatprep.subr.bf16.mxu0 %v1368
    %1505 = vmatpush1.bf16.msra.mxu0 %v1367
    %1506 = vmatprep.subr.bf16.mxu0 %v1370
    %1507 = vmatpush1.bf16.msra.mxu0 %v1369
    %1508 = vmatprep.subr.bf16.mxu0 %v1372
    %1509 = vmatpush1.bf16.msra.mxu0 %v1371
    %1510 = vmatprep.subr.bf16.mxu0 %v1374
    %1511 = vmatpush1.bf16.msra.mxu0 %v1373
    %1512 = vmatprep.subr.bf16.mxu0 %v1376
    %1513 = vmatpush1.bf16.msra.mxu0 %v1375
    %1514 = vmatprep.subr.bf16.mxu0 %v1378
    %1515 = vmatpush1.bf16.msra.mxu0 %v1377
    %1516 = vmatprep.subr.bf16.mxu0 %v1380
    %1517 = vmatpush1.bf16.msra.mxu0 %v1379
    %1518 = vmatprep.subr.bf16.mxu0 %v1382
    %1519 = vmatpush1.bf16.msra.mxu0 %v1381
    %1520 = vmatprep.subr.bf16.mxu0 %v1384
    %1521 = vmatpush1.bf16.msra.mxu0 %v1383
    %1522 = vmatprep.subr.bf16.mxu0 %v1386
    %1523 = vmatpush1.bf16.msra.mxu0 %v1385
    %1524 = vmatprep.subr.bf16.mxu0 %v1388
    %1525 = vmatpush1.bf16.msra.mxu0 %v1387
    %1526 = vmatprep.subr.bf16.mxu0 %v1390
    %1527 = vmatpush1.bf16.msra.mxu0 %v1389
    %1528 = vmatprep.mubr.bf16.mxu0 %v1070
    %1529 = vmatmul.mubr.bf16.gmra.mrb[0].mxu0 %v1069
    %v1530 = vpop.f32.mrb[0].mxu0
    %v1531 = vadd.f32 %v1490, %v1530
    %v1532 = vpop.f32.mrb[0].mxu0
    %v1533 = vadd.f32 %v1492, %v1532
    %v1534 = vpop.f32.mrb[0].mxu0
    %v1535 = vpop.f32.mrb[0].mxu0
    %1536 = vdwg.mxu0
    %s1537 = scalar_lea.vmem [#allocation6], 10
    %v1538 = vld [vmem:[%s1537] ss:$2 sm:$0x3]
    %v1540 = vlaneseq
    %v1541 = vshrl.u32 %v1540, 7
    %v1542 = vsub.s32 0, %v1541
    %v1543 = vrot.slane %v1538, %v1542
    %v1544 = vlaneseq
    %v1545 = vshrl.u32 %v1544, 7
    %v1546 = vsub.s32 1, %v1545
    %v1547 = vrot.slane %v1538, %v1546
    %v1550 = vmul.f32 %v1531, %v1543
    %v1551 = vmul.f32 %v1533, %v1547
    %s1552 = scalar_lea.vmem [#allocation6], 11
    %v1553 = vld [vmem:[%s1552] ss:$2 sm:$0x3]
    %v1555 = vlaneseq
    %v1556 = vshrl.u32 %v1555, 7
    %v1557 = vsub.s32 0, %v1556
    %v1558 = vrot.slane %v1553, %v1557
    %v1559 = vlaneseq
    %v1560 = vshrl.u32 %v1559, 7
    %v1561 = vsub.s32 1, %v1560
    %v1562 = vrot.slane %v1553, %v1561
    %v1565 = vadd.f32 %v1550, %v1558
    %v1566 = vadd.f32 %v1551, %v1562
    %v1567 = vmax.f32 %v1565, 0.0
    %v1568 = vmax.f32 %v1566, 0.0
    %v1569 = vpack.c.bf16 %v1567, %v1567
    %v1570 = vpack.c.bf16 %v1568, %v1568
    %v1571 = vld [vmem:[#allocation4] sm:$0xf]
    %v1572 = vld [vmem:[#allocation4 + $0x4] sm:$0xf]
    %v1573 = vld [vmem:[#allocation4 + $0x8] sm:$0xf]
    %v1574 = vld [vmem:[#allocation4 + $0xc] sm:$0xf]
    %v1575 = vld [vmem:[#allocation4 + $0x10] sm:$0xf]
    %v1576 = vld [vmem:[#allocation4 + $0x14] sm:$0xf]
    %v1577 = vld [vmem:[#allocation4 + $0x18] sm:$0xf]
    %v1578 = vld [vmem:[#allocation4 + $0x1c] sm:$0xf]
    %v1579 = vld [vmem:[#allocation4 + $0x20] sm:$0xf]
    %v1580 = vld [vmem:[#allocation4 + $0x24] sm:$0xf]
    %v1581 = vld [vmem:[#allocation4 + $0x28] sm:$0xf]
    %v1582 = vld [vmem:[#allocation4 + $0x2c] sm:$0xf]
    %v1583 = vld [vmem:[#allocation4 + $0x30] sm:$0xf]
    %v1584 = vld [vmem:[#allocation4 + $0x34] sm:$0xf]
    %v1585 = vld [vmem:[#allocation4 + $0x38] sm:$0xf]
    %v1586 = vld [vmem:[#allocation4 + $0x3c] sm:$0xf]
    %v1587 = vld [vmem:[#allocation4 + $0x40] sm:$0xf]
    %v1588 = vld [vmem:[#allocation4 + $0x44] sm:$0xf]
    %v1589 = vld [vmem:[#allocation4 + $0x48] sm:$0xf]
    %v1590 = vld [vmem:[#allocation4 + $0x4c] sm:$0xf]
    %v1591 = vld [vmem:[#allocation4 + $0x50] sm:$0xf]
    %v1592 = vld [vmem:[#allocation4 + $0x54] sm:$0xf]
    %v1593 = vld [vmem:[#allocation4 + $0x58] sm:$0xf]
    %v1594 = vld [vmem:[#allocation4 + $0x5c] sm:$0xf]
    %v1595 = vld [vmem:[#allocation4 + $0x60] sm:$0xf]
    %v1596 = vld [vmem:[#allocation4 + $0x64] sm:$0xf]
    %v1597 = vld [vmem:[#allocation4 + $0x68] sm:$0xf]
    %v1598 = vld [vmem:[#allocation4 + $0x6c] sm:$0xf]
    %v1599 = vld [vmem:[#allocation4 + $0x70] sm:$0xf]
    %v1600 = vld [vmem:[#allocation4 + $0x74] sm:$0xf]
    %v1601 = vld [vmem:[#allocation4 + $0x78] sm:$0xf]
    %v1602 = vld [vmem:[#allocation4 + $0x7c] sm:$0xf]
    %v1635 = vunpack.c.l.b16 %v1571
    %v1636 = vunpack.c.l.b16 %v1572
    %v1637 = vunpack.c.l.b16 %v1573
    %v1638 = vunpack.c.l.b16 %v1574
    %v1639 = vunpack.c.l.b16 %v1575
    %v1640 = vunpack.c.l.b16 %v1576
    %v1641 = vunpack.c.l.b16 %v1577
    %v1642 = vunpack.c.l.b16 %v1578
    %v1643 = vunpack.c.l.b16 %v1579
    %v1644 = vunpack.c.l.b16 %v1580
    %v1645 = vunpack.c.l.b16 %v1581
    %v1646 = vunpack.c.l.b16 %v1582
    %v1647 = vunpack.c.l.b16 %v1583
    %v1648 = vunpack.c.l.b16 %v1584
    %v1649 = vunpack.c.l.b16 %v1585
    %v1650 = vunpack.c.l.b16 %v1586
    %v1651 = vunpack.c.l.b16 %v1587
    %v1652 = vunpack.c.l.b16 %v1588
    %v1653 = vunpack.c.l.b16 %v1589
    %v1654 = vunpack.c.l.b16 %v1590
    %v1655 = vunpack.c.l.b16 %v1591
    %v1656 = vunpack.c.l.b16 %v1592
    %v1657 = vunpack.c.l.b16 %v1593
    %v1658 = vunpack.c.l.b16 %v1594
    %v1659 = vunpack.c.l.b16 %v1595
    %v1660 = vunpack.c.l.b16 %v1596
    %v1661 = vunpack.c.l.b16 %v1597
    %v1662 = vunpack.c.l.b16 %v1598
    %v1663 = vunpack.c.l.b16 %v1599
    %v1664 = vunpack.c.l.b16 %v1600
    %v1665 = vunpack.c.l.b16 %v1601
    %v1666 = vunpack.c.l.b16 %v1602
    %v1667 = vpack.c.b16 %v1636, %v1635
    %v1668 = vpack.c.b16 %v1638, %v1637
    %v1669 = vpack.c.b16 %v1640, %v1639
    %v1670 = vpack.c.b16 %v1642, %v1641
    %v1671 = vpack.c.b16 %v1644, %v1643
    %v1672 = vpack.c.b16 %v1646, %v1645
    %v1673 = vpack.c.b16 %v1648, %v1647
    %v1674 = vpack.c.b16 %v1650, %v1649
    %v1675 = vpack.c.b16 %v1652, %v1651
    %v1676 = vpack.c.b16 %v1654, %v1653
    %v1677 = vpack.c.b16 %v1656, %v1655
    %v1678 = vpack.c.b16 %v1658, %v1657
    %v1679 = vpack.c.b16 %v1660, %v1659
    %v1680 = vpack.c.b16 %v1662, %v1661
    %v1681 = vpack.c.b16 %v1664, %v1663
    %v1682 = vpack.c.b16 %v1666, %v1665
    %1699 = vmatprep.subr.bf16.mxu0 0
    %1700 = vmatpush1.bf16.msra.mxu0 %v1667
    %1701 = vmatprep.subr.bf16.mxu0 0
    %1702 = vmatpush1.bf16.msra.mxu0 %v1668
    %1703 = vmatprep.subr.bf16.mxu0 0
    %1704 = vmatpush1.bf16.msra.mxu0 %v1669
    %1705 = vmatprep.subr.bf16.mxu0 0
    %1706 = vmatpush1.bf16.msra.mxu0 %v1670
    %1707 = vmatprep.subr.bf16.mxu0 0
    %1708 = vmatpush1.bf16.msra.mxu0 %v1671
    %1709 = vmatprep.subr.bf16.mxu0 0
    %1710 = vmatpush1.bf16.msra.mxu0 %v1672
    %1711 = vmatprep.subr.bf16.mxu0 0
    %1712 = vmatpush1.bf16.msra.mxu0 %v1673
    %1713 = vmatprep.subr.bf16.mxu0 0
    %1714 = vmatpush1.bf16.msra.mxu0 %v1674
    %1715 = vmatprep.subr.bf16.mxu0 0
    %1716 = vmatpush1.bf16.msra.mxu0 %v1675
    %1717 = vmatprep.subr.bf16.mxu0 0
    %1718 = vmatpush1.bf16.msra.mxu0 %v1676
    %1719 = vmatprep.subr.bf16.mxu0 0
    %1720 = vmatpush1.bf16.msra.mxu0 %v1677
    %1721 = vmatprep.subr.bf16.mxu0 0
    %1722 = vmatpush1.bf16.msra.mxu0 %v1678
    %1723 = vmatprep.subr.bf16.mxu0 0
    %1724 = vmatpush1.bf16.msra.mxu0 %v1679
    %1725 = vmatprep.subr.bf16.mxu0 0
    %1726 = vmatpush1.bf16.msra.mxu0 %v1680
    %1727 = vmatprep.subr.bf16.mxu0 0
    %1728 = vmatpush1.bf16.msra.mxu0 %v1681
    %1729 = vmatprep.subr.bf16.mxu0 0
    %1730 = vmatpush1.bf16.msra.mxu0 %v1682
    %1731 = vmatprep.mubr.bf16.mxu0 %v1570
    %1732 = vmatmul.mubr.bf16.gmra.mrb[0].mxu0 %v1569
    %v1733 = vpop.f32.mrb[0].mxu0
    %v1734 = vadd.f32 0.0, %v1733
    %v1735 = vpop.f32.mrb[0].mxu0
    %v1736 = vpop.f32.mrb[0].mxu0
    %v1737 = vpop.f32.mrb[0].mxu0
    %1738 = vdwg.mxu0
    %v1739 = vld [vmem:[#allocation6 + $0xe] sm:$0x1]
    %v1740 = vlaneseq
    %v1741 = vshrl.u32 %v1740, 7
    %v1742 = vsub.s32 0, %v1741
    %v1743 = vrot.slane %v1739, %v1742
    %v1744 = vmul.f32 %v1734, %v1743
    %v1745 = vld [vmem:[#allocation6 + $0xf] sm:$0x1]
    %v1746 = vlaneseq
    %v1747 = vshrl.u32 %v1746, 7
    %v1748 = vsub.s32 0, %v1747
    %v1749 = vrot.slane %v1745, %v1748
    %v1750 = vadd.f32 %v1744, %v1749
    %v1751 = vmax.f32 %v1750, 0.0
    %v1752 = vpack.c.bf16 %v1751, %v1751
    %v1753 = vld [vmem:[%s8] sm:$0xf]
    %v1754 = vld [vmem:[%s8 + $0x4] sm:$0xf]
    %v1755 = vld [vmem:[%s8 + $0x8] sm:$0xf]
    %v1756 = vld [vmem:[%s8 + $0xc] sm:$0xf]
    %v1757 = vld [vmem:[%s8 + $0x10] sm:$0xf]
    %v1758 = vld [vmem:[%s8 + $0x14] sm:$0xf]
    %v1759 = vld [vmem:[%s8 + $0x18] sm:$0xf]
    %v1760 = vld [vmem:[%s8 + $0x1c] sm:$0xf]
    %v1761 = vld [vmem:[%s8 + $0x20] sm:$0xf]
    %v1762 = vld [vmem:[%s8 + $0x24] sm:$0xf]
    %v1763 = vld [vmem:[%s8 + $0x28] sm:$0xf]
    %v1764 = vld [vmem:[%s8 + $0x2c] sm:$0xf]
    %v1765 = vld [vmem:[%s8 + $0x30] sm:$0xf]
    %v1766 = vld [vmem:[%s8 + $0x34] sm:$0xf]
    %v1767 = vld [vmem:[%s8 + $0x38] sm:$0xf]
    %v1768 = vld [vmem:[%s8 + $0x3c] sm:$0xf]
    %v1785 = vunpack.c.l.b16 %v1753
    %v1786 = vunpack.c.l.b16 %v1754
    %v1787 = vunpack.c.l.b16 %v1755
    %v1788 = vunpack.c.l.b16 %v1756
    %v1789 = vunpack.c.l.b16 %v1757
    %v1790 = vunpack.c.l.b16 %v1758
    %v1791 = vunpack.c.l.b16 %v1759
    %v1792 = vunpack.c.l.b16 %v1760
    %v1793 = vunpack.c.l.b16 %v1761
    %v1794 = vunpack.c.l.b16 %v1762
    %v1795 = vunpack.c.l.b16 %v1763
    %v1796 = vunpack.c.l.b16 %v1764
    %v1797 = vunpack.c.l.b16 %v1765
    %v1798 = vunpack.c.l.b16 %v1766
    %v1799 = vunpack.c.l.b16 %v1767
    %v1800 = vunpack.c.l.b16 %v1768
    %v1801 = vpack.c.b16 %v1786, %v1785
    %v1802 = vpack.c.b16 %v1788, %v1787
    %v1803 = vpack.c.b16 %v1790, %v1789
    %v1804 = vpack.c.b16 %v1792, %v1791
    %v1805 = vpack.c.b16 %v1794, %v1793
    %v1806 = vpack.c.b16 %v1796, %v1795
    %v1807 = vpack.c.b16 %v1798, %v1797
    %v1808 = vpack.c.b16 %v1800, %v1799
    %1817 = vmatprep.subr.bf16.mxu0 0
    %1818 = vmatpush1.bf16.msra.mxu0 %v1801
    %1819 = vmatprep.subr.bf16.mxu0 0
    %1820 = vmatpush1.bf16.msra.mxu0 %v1802
    %1821 = vmatprep.subr.bf16.mxu0 0
    %1822 = vmatpush1.bf16.msra.mxu0 %v1803
    %1823 = vmatprep.subr.bf16.mxu0 0
    %1824 = vmatpush1.bf16.msra.mxu0 %v1804
    %1825 = vmatprep.subr.bf16.mxu0 0
    %1826 = vmatpush1.bf16.msra.mxu0 %v1805
    %1827 = vmatprep.subr.bf16.mxu0 0
    %1828 = vmatpush1.bf16.msra.mxu0 %v1806
    %1829 = vmatprep.subr.bf16.mxu0 0
    %1830 = vmatpush1.bf16.msra.mxu0 %v1807
    %1831 = vmatprep.subr.bf16.mxu0 0
    %1832 = vmatpush1.bf16.msra.mxu0 %v1808
    %1833 = vmatprep.subr.bf16.mxu0 0
    %1834 = vmatpush1.bf16.msra.mxu0 0
    %1835 = vmatprep.subr.bf16.mxu0 0
    %1836 = vmatpush1.bf16.msra.mxu0 0
    %1837 = vmatprep.subr.bf16.mxu0 0
    %1838 = vmatpush1.bf16.msra.mxu0 0
    %1839 = vmatprep.subr.bf16.mxu0 0
    %1840 = vmatpush1.bf16.msra.mxu0 0
    %1841 = vmatprep.subr.bf16.mxu0 0
    %1842 = vmatpush1.bf16.msra.mxu0 0
    %1843 = vmatprep.subr.bf16.mxu0 0
    %1844 = vmatpush1.bf16.msra.mxu0 0
    %1845 = vmatprep.subr.bf16.mxu0 0
    %1846 = vmatpush1.bf16.msra.mxu0 0
    %1847 = vmatprep.subr.bf16.mxu0 0
    %1848 = vmatpush1.bf16.msra.mxu0 0
    %1849 = vmatprep.mubr.bf16.mxu0 0
    %1850 = vmatmul.mubr.bf16.gmra.mrb[0].mxu0 %v1752
    %v1851 = vpop.f32.mrb[0].mxu0
    %v1852 = vadd.f32 0.0, %v1851
    %v1853 = vpop.f32.mrb[0].mxu0
    %v1854 = vpop.f32.mrb[0].mxu0
    %v1855 = vpop.f32.mrb[0].mxu0
    %1856 = vdwg.mxu0
    %v1857 = vld [vmem:[#allocation6 + $0x10] sm:$0x1]
    %v1858 = vlaneseq
    %v1859 = vshrl.u32 %v1858, 7
    %v1860 = vsub.s32 0, %v1859
    %v1861 = vrot.slane %v1857, %v1860
    %v1862 = vmul.f32 %v1852, %v1861
    %v1863 = vld [vmem:[#allocation6 + $0x11] sm:$0x1]
    %v1864 = vlaneseq
    %v1865 = vshrl.u32 %v1864, 7
    %v1866 = vsub.s32 0, %v1865
    %v1867 = vrot.slane %v1863, %v1866
    %v1868 = vadd.f32 %v1862, %v1867
    %v1869 = vmax.f32 %v1868, 0.0
    %v1870 = vpack.c.bf16 %v1869, %v1869
    %v1871 = vld [vmem:[%s9] sm:$0xf]
    %v1872 = vld [vmem:[%s9 + $0x4] sm:$0xf]
    %v1875 = vunpack.c.l.b16 %v1871
    %v1876 = vunpack.c.l.b16 %v1872
    %v1877 = vpack.c.b16 %v1876, %v1875
    %v1880 = vsel %vm196, %v1870, 0
    %1882 = vmatprep.subr.bf16.mxu0 0
    %1883 = vmatpush1.bf16.msra.mxu0 %v1877
    %1884 = vmatprep.subr.bf16.mxu0 0
    %1885 = vmatpush1.bf16.msra.mxu0 0
    %1886 = vmatprep.subr.bf16.mxu0 0
    %1887 = vmatpush1.bf16.msra.mxu0 0
    %1888 = vmatprep.subr.bf16.mxu0 0
    %1889 = vmatpush1.bf16.msra.mxu0 0
    %1890 = vmatprep.subr.bf16.mxu0 0
    %1891 = vmatpush1.bf16.msra.mxu0 0
    %1892 = vmatprep.subr.bf16.mxu0 0
    %1893 = vmatpush1.bf16.msra.mxu0 0
    %1894 = vmatprep.subr.bf16.mxu0 0
    %1895 = vmatpush1.bf16.msra.mxu0 0
    %1896 = vmatprep.subr.bf16.mxu0 0
    %1897 = vmatpush1.bf16.msra.mxu0 0
    %1898 = vmatprep.subr.bf16.mxu0 0
    %1899 = vmatpush1.bf16.msra.mxu0 0
    %1900 = vmatprep.subr.bf16.mxu0 0
    %1901 = vmatpush1.bf16.msra.mxu0 0
    %1902 = vmatprep.subr.bf16.mxu0 0
    %1903 = vmatpush1.bf16.msra.mxu0 0
    %1904 = vmatprep.subr.bf16.mxu0 0
    %1905 = vmatpush1.bf16.msra.mxu0 0
    %1906 = vmatprep.subr.bf16.mxu0 0
    %1907 = vmatpush1.bf16.msra.mxu0 0
    %1908 = vmatprep.subr.bf16.mxu0 0
    %1909 = vmatpush1.bf16.msra.mxu0 0
    %1910 = vmatprep.subr.bf16.mxu0 0
    %1911 = vmatpush1.bf16.msra.mxu0 0
    %1912 = vmatprep.subr.bf16.mxu0 0
    %1913 = vmatpush1.bf16.msra.mxu0 0
    %1914 = vmatprep.mubr.bf16.mxu0 0
    %1915 = vmatmul.mubr.bf16.gmra.mrb[0].mxu0 %v1880
    %v1916 = vpop.f32.mrb[0].mxu0
    %v1917 = vadd.f32 0.0, %v1916
    %v1918 = vpop.f32.mrb[0].mxu0
    %v1919 = vpop.f32.mrb[0].mxu0
    %v1920 = vpop.f32.mrb[0].mxu0
    %1921 = vdwg.mxu0
    %v1922 = vld [vmem:[#allocation6 + $0x12] sm:$0x1]
    %v1923 = vlaneseq
    %v1924 = vshrl.u32 %v1923, 7
    %v1925 = vsub.s32 0, %v1924
    %v1926 = vrot.slane %v1922, %v1925
    %v1927 = vmul.f32 %v1917, %v1926
    %v1928 = vld [vmem:[#allocation6 + $0x13] sm:$0x1]
    %v1929 = vlaneseq
    %v1930 = vshrl.u32 %v1929, 7
    %v1931 = vsub.s32 0, %v1930
    %v1932 = vrot.slane %v1928, %v1931
    %v1933 = vadd.f32 %v1927, %v1932
    %vm1934 = vcmask 1024
    %1935 = vst.msk [vmem:[%s12] sm:$0x3] %vm1934, %v1933
    // Predicated region
    $region62: #{my_discriminator_forward.1} parent=1 // pred_check
      _
    $region63: #{my_discriminator_forward.1} parent=1 // pred_check_branch
      %1937 = sbr.rel (0) target = $region65
    $region64: #{my_discriminator_forward.1} parent=1 // pred_region
      _
    $region65: #{my_discriminator_forward.1} parent=1 // pred_fallthru
      _
    // Predicated region
    $region66: #{my_discriminator_forward.1} parent=1 // pred_check
      _
    $region67: #{my_discriminator_forward.1} parent=1 // pred_check_branch
      %1939 = sbr.rel (0) target = $region69
    $region68: #{my_discriminator_forward.1} parent=1 // pred_region
      _
    $region69: #{my_discriminator_forward.1} parent=1 // pred_fallthru
      _
    %1940 = vsyncpa [#allocation3], 1
    %1941 = vsyncpa [#allocation5], 1

</llo_original>
